<compile_context>
chip_gen: v6e
topology: v6e:2x2x1
jax: 0.10.0
libtpu: 0.0.40
codegen_flags: <defaults>
</compile_context>

<pallas_src>
import jax
import jax.numpy as jnp
from jax.experimental import pallas as pl
from jax.experimental.pallas import tpu as pltpu


def mf_kernel(ew_ref, eb_ref, x_ref, w_ref, b_ref, bias_ref, out_ref):
    h = ew_ref.shape[1] // 2

    # Gathered embeddings [user | item] rows, streamed bf16 -> compute in f32 (VPU).
    ew = ew_ref[...].astype(jnp.float32)                     # [tb, 2H]
    eb = eb_ref[...].astype(jnp.float32)                     # [tb, 2]  packed (user_bias, item_bias)
    ue = ew[:, :h] + eb[:, 0:1]                              # [tb, H]
    ie = ew[:, h:] + eb[:, 1:2]                              # [tb, H]

    # Fused side-info linears: [profile | attr] @ blockdiag(Wu^T, Wi^T) + [bu | bi]
    # -> single MXU push stream, result [tb, 2H] = [up | ia].
    lin = jnp.dot(x_ref[...], w_ref[...],
                  preferred_element_type=jnp.float32) + b_ref[...]
    up = lin[:, :h]
    ia = lin[:, h:]

    mf = ue * ie + ue * up + ie * ia                         # [tb, H]

    # Lane-dense row reduction + store: ones(1,H) · mf(tb,H)^T on the MXU gives the
    # per-row sums already laid out along lanes ([1, tb]), so the output store is an
    # unmasked, lane-dense vst instead of a masked [tb, 1] column store (and avoids
    # a sublane->lane transpose that an XLU reduce would need).
    ones = jnp.ones((1, h), dtype=jnp.float32)
    row = jax.lax.dot_general(
        ones, mf, (((1,), (1,)), ((), ())),
        precision=jax.lax.Precision.HIGHEST,
        preferred_element_type=jnp.float32)                  # [1, tb]
    out_ref[...] = row + bias_ref[0]


def mf_forward(params, user, item, user_profile, item_attr, rating, *, tb=256):
    """tb: batch tile; multiple of 128 (use >=256 on v6e/v7x; per-step VMEM is only
    ~100 KiB double-buffered, far under v7x's 64 MiB, so larger B -> larger tb is fine)."""
    B = user.shape[0]
    H = params["user_weight"].shape[1]
    Pu = user_profile.shape[1]
    Pi = item_attr.shape[1]
    P = Pu + Pi
    assert tb % 128 == 0, "tb must be a multiple of 128 (lane-dense output blocks)"

    nblk = -(-B // tb)          # cdiv: pad the batch instead of rejecting it
    Bp = nblk * tb

    # ---- glue (pure indexing / layout; all arithmetic lives in the kernel) ----
    # Embedding row-gather stays in XLA; tables are stored bf16 so the gathered copies
    # stream at half the bytes.
    # TODO(synk): a fully fused in-kernel gather (scalar-prefetched indices + per-row DMA
    # from the HBM tables) is possible but descriptor-bound for H=32-wide rows; kept in XLA.
    ew = jnp.concatenate([jnp.take(params["user_weight"], user, axis=0),
                          jnp.take(params["item_weight"], item, axis=0)], axis=-1)   # [B,2H] bf16
    eb = jnp.concatenate([jnp.take(params["user_bias"], user, axis=0),
                          jnp.take(params["item_bias"], item, axis=0)], axis=-1)     # [B,2]  f32
    x = jnp.concatenate([user_profile, item_attr], axis=-1).astype(jnp.bfloat16)     # [B,P]  bf16

    pad = Bp - B
    if pad:
        ew = jnp.pad(ew, ((0, pad), (0, 0)))
        eb = jnp.pad(eb, ((0, pad), (0, 0)))
        x = jnp.pad(x, ((0, pad), (0, 0)))

    # Block-diagonal fused weight: [profile|attr] @ blockdiag(Wu^T, Wi^T) == [up | ia].
    w_cat = jnp.zeros((P, 2 * H), jnp.float32)
    w_cat = w_cat.at[:Pu, :H].set(params["wu_t"]).at[Pu:, H:].set(params["wi_t"])
    w_cat = w_cat.astype(jnp.bfloat16)                                                # [P, 2H]
    b_cat = jnp.concatenate([params["bu"], params["bi"]], axis=-1)                    # [1, 2H] f32
    bias = params["bias"].astype(jnp.float32).reshape(1)

    row = lambda g: (g, 0)      # batch-tiled operands
    full = lambda g: (0, 0)     # resident weights: same full block every grid step

    out = pl.pallas_call(
        mf_kernel,
        out_shape=jax.ShapeDtypeStruct((1, Bp), jnp.float32),
        grid=(nblk,),
        in_specs=[
            pl.BlockSpec((tb, 2 * H), row),     # gathered [user|item] embedding rows (bf16)
            pl.BlockSpec((tb, 2), row),         # packed per-row biases (f32)
            pl.BlockSpec((tb, P), row),         # [user_profile | item_attr] (bf16)
            pl.BlockSpec((P, 2 * H), full),     # block-diagonal fused Linear weight (bf16)
            pl.BlockSpec((1, 2 * H), full),     # fused Linear bias (f32)
            pl.BlockSpec(memory_space=pltpu.MemorySpace.SMEM),   # global scalar bias
        ],
        out_specs=pl.BlockSpec((1, tb), lambda g: (0, g)),
        compiler_params=pltpu.CompilerParams(
            dimension_semantics=("parallel",),           # batch tiles are independent
            vmem_limit_bytes=32 * 1024 * 1024,           # safe on v5e/v6e (128 MiB) and v7x (64 MiB)
        ),
    )(ew, eb, x, w_cat, b_cat, bias)

    target_rating = out[0, :B]
    # TODO(synk): loss_fn is external in the reference repo; MSE assumed here.
    loss = jnp.mean((target_rating - rating) ** 2)
    return {"target_rating": target_rating, "loss": loss}


def init_params(key, num_users, num_items, hidden_size, pu, pi):
    ks = jax.random.split(key, 6)
    # reset_parameters(): N(0, 0.01) embeddings, zero biases, zero global bias.
    # Embedding tables stored bf16 (HBM-bound kernel -> half the streamed bytes).
    params = {
        "user_weight": (0.01 * jax.random.normal(ks[0], (num_users, hidden_size),
                                                 jnp.float32)).astype(jnp.bfloat16),
        "item_weight": (0.01 * jax.random.normal(ks[1], (num_items, hidden_size),
                                                 jnp.float32)).astype(jnp.bfloat16),
        "user_bias": jnp.zeros((num_users, 1), jnp.float32),
        "item_bias": jnp.zeros((num_items, 1), jnp.float32),
        "bias": jnp.zeros((1,), jnp.float32),
    }
    # nn.Linear default init: U(-1/sqrt(fan_in), 1/sqrt(fan_in)); stored pre-transposed [P, H].
    lim_u = 1.0 / (pu ** 0.5)
    lim_i = 1.0 / (pi ** 0.5)
    params["wu_t"] = jax.random.uniform(ks[2], (pu, hidden_size), jnp.float32, -lim_u, lim_u)
    params["bu"] = jax.random.uniform(ks[3], (1, hidden_size), jnp.float32, -lim_u, lim_u)
    params["wi_t"] = jax.random.uniform(ks[4], (pi, hidden_size), jnp.float32, -lim_i, lim_i)
    params["bi"] = jax.random.uniform(ks[5], (1, hidden_size), jnp.float32, -lim_i, lim_i)
    return params


def mf_reference(params, user, item, user_profile, item_attr, rating):
    # Same math as the PyTorch module, with the same (intentional) bf16 streaming
    # quantization of embeddings / matmul inputs that the kernel uses.
    f32 = jnp.float32
    ue = params["user_weight"][user].astype(f32) + params["user_bias"][user]
    ie = params["item_weight"][item].astype(f32) + params["item_bias"][item]
    up = jnp.dot(user_profile.astype(jnp.bfloat16), params["wu_t"].astype(jnp.bfloat16),
                 preferred_element_type=f32) + params["bu"]
    ia = jnp.dot(item_attr.astype(jnp.bfloat16), params["wi_t"].astype(jnp.bfloat16),
                 preferred_element_type=f32) + params["bi"]
    mf = ue * ie + ue * up + ie * ia
    tr = mf.sum(-1) + params["bias"][0]
    return {"target_rating": tr, "loss": jnp.mean((tr - rating) ** 2)}


if __name__ == "__main__":
    num_users, num_items = 24, 40
    hidden_size = 32
    pu, pi = 16, 16            # info_size = {'user_profile': 16, 'item_attr': 16}
    B = 16                     # not a multiple of the tile -> exercises batch padding

    key = jax.random.PRNGKey(0)
    kp, ku, ki, kr, kup, kia = jax.random.split(key, 6)

    params = init_params(kp, num_users, num_items, hidden_size, pu, pi)
    user = jax.random.randint(ku, (B,), 0, num_users, dtype=jnp.int32)
    item = jax.random.randint(ki, (B,), 0, num_items, dtype=jnp.int32)
    rating = jax.random.normal(kr, (B,), jnp.float32)
    user_profile = jax.random.normal(kup, (B, pu), jnp.float32)
    item_attr = jax.random.normal(kia, (B, pi), jnp.float32)

    out = mf_forward(params, user, item, user_profile, item_attr, rating, tb=256)
    jax.block_until_ready(out)

    ref = mf_reference(params, user, item, user_profile, item_attr, rating)
    assert out["target_rating"].shape == (B,)
    assert jnp.allclose(out["target_rating"], ref["target_rating"], atol=1e-4), (
        out["target_rating"], ref["target_rating"])
    assert jnp.allclose(out["loss"], ref["loss"], atol=1e-4)

    print("KERNEL_OK")
</pallas_src>

<mosaic_0001>
module attributes {stable_mosaic.version = 11 : i64} {
  func.func @mf_kernel(%arg0: i32, %arg1: memref<256x64xbf16, #tpu.memory_space<vmem>>, %arg2: memref<256x2xf32, #tpu.memory_space<vmem>>, %arg3: memref<256x32xbf16, #tpu.memory_space<vmem>>, %arg4: memref<32x64xbf16, #tpu.memory_space<vmem>>, %arg5: memref<1x64xf32, #tpu.memory_space<vmem>>, %arg6: memref<1xf32, #tpu.memory_space<smem>>, %arg7: memref<1x256xf32, #tpu.memory_space<vmem>>) attributes {dimension_semantics = [#tpu.dimension_semantics<parallel>], iteration_bounds = array<i64: 1>, scalar_prefetch = 0 : i64, scratch_operands = 0 : i64, tpu.core_type = #tpu.core_type<tc>, window_params = [{transform_indices = @transform_0, window_bounds = array<i64: 256, 64>}, {transform_indices = @transform_1, window_bounds = array<i64: 256, 2>}, {transform_indices = @transform_2, window_bounds = array<i64: 256, 32>}, {pipeline_mode = #tpu.pipeline_mode<synchronous>, transform_indices = @transform_3, window_bounds = array<i64: 32, 64>}, {pipeline_mode = #tpu.pipeline_mode<synchronous>, transform_indices = @transform_4, window_bounds = array<i64: 1, 64>}, {transform_indices = @transform_5, window_bounds = array<i64: 1>}, {transform_indices = @transform_6, window_bounds = array<i64: 1, 256>}]} {
    %c0 = arith.constant 0 : index
    %c0_0 = arith.constant 0 : index
    %0 = vector.load %arg1[%c0, %c0_0] : memref<256x64xbf16, #tpu.memory_space<vmem>>, vector<256x64xbf16>
    %1 = arith.extf %0 : vector<256x64xbf16> to vector<256x64xf32>
    %c0_1 = arith.constant 0 : index
    %c0_2 = arith.constant 0 : index
    %2 = vector.load %arg2[%c0_1, %c0_2] : memref<256x2xf32, #tpu.memory_space<vmem>>, vector<256x2xf32>
    %3 = vector.extract_strided_slice %1 {offsets = [0, 0], sizes = [256, 32], strides = [1, 1]} : vector<256x64xf32> to vector<256x32xf32>
    %4 = vector.extract_strided_slice %2 {offsets = [0, 0], sizes = [256, 1], strides = [1, 1]} : vector<256x2xf32> to vector<256x1xf32>
    %5 = vector.broadcast %4 : vector<256x1xf32> to vector<256x32xf32>
    %6 = arith.addf %3, %5 : vector<256x32xf32>
    %7 = vector.extract_strided_slice %1 {offsets = [0, 32], sizes = [256, 32], strides = [1, 1]} : vector<256x64xf32> to vector<256x32xf32>
    %8 = vector.extract_strided_slice %2 {offsets = [0, 1], sizes = [256, 1], strides = [1, 1]} : vector<256x2xf32> to vector<256x1xf32>
    %9 = vector.broadcast %8 : vector<256x1xf32> to vector<256x32xf32>
    %10 = arith.addf %7, %9 : vector<256x32xf32>
    %c0_3 = arith.constant 0 : index
    %c0_4 = arith.constant 0 : index
    %11 = vector.load %arg3[%c0_3, %c0_4] : memref<256x32xbf16, #tpu.memory_space<vmem>>, vector<256x32xbf16>
    %c0_5 = arith.constant 0 : index
    %c0_6 = arith.constant 0 : index
    %12 = vector.load %arg4[%c0_5, %c0_6] : memref<32x64xbf16, #tpu.memory_space<vmem>>, vector<32x64xbf16>
    %cst = arith.constant dense<0.000000e+00> : vector<256x64xf32>
    %13 = tpu.matmul %11, %12, %cst {dimension_numbers = #tpu.dot_dimension_numbers<[1], [0], [0], [1], [0, 0, 1, 1], [], []>} : vector<256x32xbf16>, vector<32x64xbf16>, vector<256x64xf32> -> vector<256x64xf32>
    %c0_7 = arith.constant 0 : index
    %c0_8 = arith.constant 0 : index
    %14 = vector.load %arg5[%c0_7, %c0_8] : memref<1x64xf32, #tpu.memory_space<vmem>>, vector<1x64xf32>
    %15 = vector.broadcast %14 : vector<1x64xf32> to vector<256x64xf32>
    %16 = arith.addf %13, %15 : vector<256x64xf32>
    %17 = vector.extract_strided_slice %16 {offsets = [0, 0], sizes = [256, 32], strides = [1, 1]} : vector<256x64xf32> to vector<256x32xf32>
    %18 = vector.extract_strided_slice %16 {offsets = [0, 32], sizes = [256, 32], strides = [1, 1]} : vector<256x64xf32> to vector<256x32xf32>
    %19 = arith.mulf %6, %10 : vector<256x32xf32>
    %20 = arith.mulf %6, %17 : vector<256x32xf32>
    %21 = arith.addf %19, %20 : vector<256x32xf32>
    %22 = arith.mulf %10, %18 : vector<256x32xf32>
    %23 = arith.addf %21, %22 : vector<256x32xf32>
    %cst_9 = arith.constant 1.000000e+00 : f32
    %24 = vector.broadcast %cst_9 : f32 to vector<1x32xf32>
    %cst_10 = arith.constant dense<0.000000e+00> : vector<1x256xf32>
    %25 = tpu.matmul %24, %23, %cst_10 {dimension_numbers = #tpu.dot_dimension_numbers<[1], [1], [0], [0], [0, 0, 1, 0], [], []>, precision = #tpu.contract_precision<fp32>} : vector<1x32xf32>, vector<256x32xf32>, vector<1x256xf32> -> vector<1x256xf32>
    %c0_11 = arith.constant 0 : index
    %26 = memref.load %arg6[%c0_11] : memref<1xf32, #tpu.memory_space<smem>>
    %27 = vector.broadcast %26 : f32 to vector<1x256xf32>
    %28 = arith.addf %25, %27 : vector<1x256xf32>
    %c0_12 = arith.constant 0 : index
    %c0_13 = arith.constant 0 : index
    %29 = vector.load %arg7[%c0_12, %c0_13] : memref<1x256xf32, #tpu.memory_space<vmem>>, vector<1x256xf32>
    tpu.vector_store %arg7[%c0_12, %c0_13], %28 {strides = array<i32>} : memref<1x256xf32, #tpu.memory_space<vmem>>, vector<1x256xf32>,
    return
  }
  func.func @transform_0(%arg0: i32) -> (i32, i32) {
    %c0_i32 = arith.constant 0 : i32
    %c0_i32_0 = arith.constant 0 : i32
    return %arg0, %c0_i32 : i32, i32
  }
  func.func @transform_1(%arg0: i32) -> (i32, i32) {
    %c0_i32 = arith.constant 0 : i32
    %c0_i32_0 = arith.constant 0 : i32
    return %arg0, %c0_i32 : i32, i32
  }
  func.func @transform_2(%arg0: i32) -> (i32, i32) {
    %c0_i32 = arith.constant 0 : i32
    %c0_i32_0 = arith.constant 0 : i32
    return %arg0, %c0_i32 : i32, i32
  }
  func.func @transform_3(%arg0: i32) -> (i32, i32) {
    %c0_i32 = arith.constant 0 : i32
    %c0_i32_0 = arith.constant 0 : i32
    %c0_i32_1 = arith.constant 0 : i32
    return %c0_i32, %c0_i32_0 : i32, i32
  }
  func.func @transform_4(%arg0: i32) -> (i32, i32) {
    %c0_i32 = arith.constant 0 : i32
    %c0_i32_0 = arith.constant 0 : i32
    %c0_i32_1 = arith.constant 0 : i32
    return %c0_i32, %c0_i32_0 : i32, i32
  }
  func.func @transform_5(%arg0: i32) -> i32 {
    %c0_i32 = arith.constant 0 : i32
    %c0_i32_0 = arith.constant 0 : i32
    return %c0_i32 : i32
  }
  func.func @transform_6(%arg0: i32) -> (i32, i32) {
    %c0_i32 = arith.constant 0 : i32
    %c0_i32_0 = arith.constant 0 : i32
    return %c0_i32, %arg0 : i32, i32
  }
}

</mosaic_0001>

<llo_original>
// kernel: tpu_custom_call.1
$region0: #{tpu_custom_call.1}
  #allocation0 [shape = 'u32[]', space=smem, size = 0x4, offset = 0x4, fixed_abs, tag = 'smem constant byte address 0x4 - core index']
  #allocation1 [shape = 'u32[144,128]{1,0:T(1,128)}', space=vmem, size = 0x12000, scoped, tag = 'internal scratch']
  #allocation2 [shape = 'f32[1]{0:T(128)S(6)}', space=smem, size = 0x200, scoped, tag = 'scoped memory for tpu_custom_call.1']
  %s0 = inlined_call_operand.vmem [shape: bf16[256,64], index: 0, kind: input, shape index: {}]
  %s1 = inlined_call_operand.vmem [shape: f32[256,2], index: 1, kind: input, shape index: {}]
  %s2 = inlined_call_operand.vmem [shape: bf16[256,32], index: 2, kind: input, shape index: {}]
  %s3 = inlined_call_operand.vmem [shape: bf16[32,64], index: 3, kind: input, shape index: {}]
  %s4 = inlined_call_operand.vmem [shape: f32[1,64], index: 4, kind: input, shape index: {}]
  %s5 = inlined_call_operand.<no memory space> [shape: f32[1], index: 5, kind: input, shape index: {}]
  %s6 = inlined_call_operand.hbm [shape: f32[1,256], index: 6, kind: output, shape index: {}]
  %s7 = sld [smem:[#allocation0]]
  $region34: #{tpu_custom_call.1} parent=0
    _
  %s9 = ssub.s32 1, %s7
  %s10 = scalar_select 0, %s9, %s7
  %11 = sst [smem:[#allocation2]] %s5
  $region1: #{tpu_custom_call.1} parent=0
    #allocation3 [shape = 'u8[1024]{0}', space=vmem, size = 0x400, scoped, tag = 'output window, operand 0, single buffered']
    #allocation4 [shape = 's32[1]{0}', space=sflag, size = 0x4, scoped, tag = 'scoped memory for tpu_custom_call.1']
    %12 = vsyncpa [#allocation4], 0
    // Predicated region
    $region2: #{tpu_custom_call.1} parent=1 // pred_check
      _
    $region3: #{tpu_custom_call.1} parent=1 // pred_check_branch
      %14 = sbr.rel (0) target = $region5
    $region4: #{tpu_custom_call.1} parent=1 // pred_region
      _
    $region5: #{tpu_custom_call.1} parent=1 // pred_fallthru
      _
    // Predicated region
    $region6: #{tpu_custom_call.1} parent=1 // pred_check
      _
    $region7: #{tpu_custom_call.1} parent=1 // pred_check_branch
      %16 = sbr.rel (0) target = $region9
    $region8: #{tpu_custom_call.1} parent=1 // pred_region
      _
    $region9: #{tpu_custom_call.1} parent=1 // pred_fallthru
      _
    // Predicated region
    $region10: #{tpu_custom_call.1} parent=1 // pred_check
      _
    $region11: #{tpu_custom_call.1} parent=1 // pred_check_branch
      %18 = sbr.rel (0) target = $region13
    $region12: #{tpu_custom_call.1} parent=1 // pred_region
      _
    $region13: #{tpu_custom_call.1} parent=1 // pred_fallthru
      _
    // Predicated region
    $region14: #{tpu_custom_call.1} parent=1 // pred_check
      _
    $region15: #{tpu_custom_call.1} parent=1 // pred_check_branch
      %20 = sbr.rel (0) target = $region17
    $region16: #{tpu_custom_call.1} parent=1 // pred_region
      _
    $region17: #{tpu_custom_call.1} parent=1 // pred_fallthru
      _
    // Predicated region
    $region18: #{tpu_custom_call.1} parent=1 // pred_check
      _
    $region19: #{tpu_custom_call.1} parent=1 // pred_check_branch
      %22 = sbr.rel (0) target = $region21
    $region20: #{tpu_custom_call.1} parent=1 // pred_region
      _
    $region21: #{tpu_custom_call.1} parent=1 // pred_fallthru
      _
    // Predicated region
    $region22: #{tpu_custom_call.1} parent=1 // pred_check
      _
    $region23: #{tpu_custom_call.1} parent=1 // pred_check_branch
      %24 = sbr.rel (0) target = $region25
    $region24: #{tpu_custom_call.1} parent=1 // pred_region
      _
    $region25: #{tpu_custom_call.1} parent=1 // pred_fallthru
      _
    %v26 = vld [vmem:[%s0] sm:$0xf]
    %v27 = vld [vmem:[%s0 + $0x4] sm:$0xf]
    %v28 = vld [vmem:[%s0 + $0x8] sm:$0xf]
    %v29 = vld [vmem:[%s0 + $0xc] sm:$0xf]
    %v30 = vld [vmem:[%s0 + $0x10] sm:$0xf]
    %v31 = vld [vmem:[%s0 + $0x14] sm:$0xf]
    %v32 = vld [vmem:[%s0 + $0x18] sm:$0xf]
    %v33 = vld [vmem:[%s0 + $0x1c] sm:$0xf]
    %v34 = vld [vmem:[%s0 + $0x20] sm:$0xf]
    %v35 = vld [vmem:[%s0 + $0x24] sm:$0xf]
    %v36 = vld [vmem:[%s0 + $0x28] sm:$0xf]
    %v37 = vld [vmem:[%s0 + $0x2c] sm:$0xf]
    %v38 = vld [vmem:[%s0 + $0x30] sm:$0xf]
    %v39 = vld [vmem:[%s0 + $0x34] sm:$0xf]
    %v40 = vld [vmem:[%s0 + $0x38] sm:$0xf]
    %v41 = vld [vmem:[%s0 + $0x3c] sm:$0xf]
    %v42 = vld [vmem:[%s0 + $0x40] sm:$0xf]
    %v43 = vld [vmem:[%s0 + $0x44] sm:$0xf]
    %v44 = vld [vmem:[%s0 + $0x48] sm:$0xf]
    %v45 = vld [vmem:[%s0 + $0x4c] sm:$0xf]
    %v46 = vld [vmem:[%s0 + $0x50] sm:$0xf]
    %v47 = vld [vmem:[%s0 + $0x54] sm:$0xf]
    %v48 = vld [vmem:[%s0 + $0x58] sm:$0xf]
    %v49 = vld [vmem:[%s0 + $0x5c] sm:$0xf]
    %v50 = vld [vmem:[%s0 + $0x60] sm:$0xf]
    %v51 = vld [vmem:[%s0 + $0x64] sm:$0xf]
    %v52 = vld [vmem:[%s0 + $0x68] sm:$0xf]
    %v53 = vld [vmem:[%s0 + $0x6c] sm:$0xf]
    %v54 = vld [vmem:[%s0 + $0x70] sm:$0xf]
    %v55 = vld [vmem:[%s0 + $0x74] sm:$0xf]
    %v56 = vld [vmem:[%s0 + $0x78] sm:$0xf]
    %v57 = vld [vmem:[%s0 + $0x7c] sm:$0xf]
    %v58 = vunpack.c.l.bf16 %v26
    %v59 = vunpack.c.l.bf16 %v27
    %v60 = vunpack.c.l.bf16 %v28
    %v61 = vunpack.c.l.bf16 %v29
    %v62 = vunpack.c.l.bf16 %v30
    %v63 = vunpack.c.l.bf16 %v31
    %v64 = vunpack.c.l.bf16 %v32
    %v65 = vunpack.c.l.bf16 %v33
    %v66 = vunpack.c.l.bf16 %v34
    %v67 = vunpack.c.l.bf16 %v35
    %v68 = vunpack.c.l.bf16 %v36
    %v69 = vunpack.c.l.bf16 %v37
    %v70 = vunpack.c.l.bf16 %v38
    %v71 = vunpack.c.l.bf16 %v39
    %v72 = vunpack.c.l.bf16 %v40
    %v73 = vunpack.c.l.bf16 %v41
    %v74 = vunpack.c.l.bf16 %v42
    %v75 = vunpack.c.l.bf16 %v43
    %v76 = vunpack.c.l.bf16 %v44
    %v77 = vunpack.c.l.bf16 %v45
    %v78 = vunpack.c.l.bf16 %v46
    %v79 = vunpack.c.l.bf16 %v47
    %v80 = vunpack.c.l.bf16 %v48
    %v81 = vunpack.c.l.bf16 %v49
    %v82 = vunpack.c.l.bf16 %v50
    %v83 = vunpack.c.l.bf16 %v51
    %v84 = vunpack.c.l.bf16 %v52
    %v85 = vunpack.c.l.bf16 %v53
    %v86 = vunpack.c.l.bf16 %v54
    %v87 = vunpack.c.l.bf16 %v55
    %v88 = vunpack.c.l.bf16 %v56
    %v89 = vunpack.c.l.bf16 %v57
    %v90 = vld [vmem:[%s1] sm:$0xff]
    %v91 = vld [vmem:[%s1 + $0x8] sm:$0xff]
    %v92 = vld [vmem:[%s1 + $0x10] sm:$0xff]
    %v93 = vld [vmem:[%s1 + $0x18] sm:$0xff]
    %v94 = vld [vmem:[%s1 + $0x20] sm:$0xff]
    %v95 = vld [vmem:[%s1 + $0x28] sm:$0xff]
    %v96 = vld [vmem:[%s1 + $0x30] sm:$0xff]
    %v97 = vld [vmem:[%s1 + $0x38] sm:$0xff]
    %v98 = vld [vmem:[%s1 + $0x40] sm:$0xff]
    %v99 = vld [vmem:[%s1 + $0x48] sm:$0xff]
    %v100 = vld [vmem:[%s1 + $0x50] sm:$0xff]
    %v101 = vld [vmem:[%s1 + $0x58] sm:$0xff]
    %v102 = vld [vmem:[%s1 + $0x60] sm:$0xff]
    %v103 = vld [vmem:[%s1 + $0x68] sm:$0xff]
    %v104 = vld [vmem:[%s1 + $0x70] sm:$0xff]
    %v105 = vld [vmem:[%s1 + $0x78] sm:$0xff]
    %v106 = vld [vmem:[%s1 + $0x80] sm:$0xff]
    %v107 = vld [vmem:[%s1 + $0x88] sm:$0xff]
    %v108 = vld [vmem:[%s1 + $0x90] sm:$0xff]
    %v109 = vld [vmem:[%s1 + $0x98] sm:$0xff]
    %v110 = vld [vmem:[%s1 + $0xa0] sm:$0xff]
    %v111 = vld [vmem:[%s1 + $0xa8] sm:$0xff]
    %v112 = vld [vmem:[%s1 + $0xb0] sm:$0xff]
    %v113 = vld [vmem:[%s1 + $0xb8] sm:$0xff]
    %v114 = vld [vmem:[%s1 + $0xc0] sm:$0xff]
    %v115 = vld [vmem:[%s1 + $0xc8] sm:$0xff]
    %v116 = vld [vmem:[%s1 + $0xd0] sm:$0xff]
    %v117 = vld [vmem:[%s1 + $0xd8] sm:$0xff]
    %v118 = vld [vmem:[%s1 + $0xe0] sm:$0xff]
    %v119 = vld [vmem:[%s1 + $0xe8] sm:$0xff]
    %v120 = vld [vmem:[%s1 + $0xf0] sm:$0xff]
    %v121 = vld [vmem:[%s1 + $0xf8] sm:$0xff]
    %123 = vset.pattern.permute.xlu0 0
    %124 = vperm.xlu0 %123, %v90
    %v125 = vpop.permute.xlu0 %124
    %128 = vset.pattern.permute.xlu0 0
    %129 = vperm.xlu0 %128, %v91
    %v130 = vpop.permute.xlu0 %129
    %133 = vset.pattern.permute.xlu0 0
    %134 = vperm.xlu0 %133, %v92
    %v135 = vpop.permute.xlu0 %134
    %138 = vset.pattern.permute.xlu0 0
    %139 = vperm.xlu0 %138, %v93
    %v140 = vpop.permute.xlu0 %139
    %143 = vset.pattern.permute.xlu0 0
    %144 = vperm.xlu0 %143, %v94
    %v145 = vpop.permute.xlu0 %144
    %148 = vset.pattern.permute.xlu0 0
    %149 = vperm.xlu0 %148, %v95
    %v150 = vpop.permute.xlu0 %149
    %153 = vset.pattern.permute.xlu0 0
    %154 = vperm.xlu0 %153, %v96
    %v155 = vpop.permute.xlu0 %154
    %158 = vset.pattern.permute.xlu0 0
    %159 = vperm.xlu0 %158, %v97
    %v160 = vpop.permute.xlu0 %159
    %163 = vset.pattern.permute.xlu0 0
    %164 = vperm.xlu0 %163, %v98
    %v165 = vpop.permute.xlu0 %164
    %168 = vset.pattern.permute.xlu0 0
    %169 = vperm.xlu0 %168, %v99
    %v170 = vpop.permute.xlu0 %169
    %173 = vset.pattern.permute.xlu0 0
    %174 = vperm.xlu0 %173, %v100
    %v175 = vpop.permute.xlu0 %174
    %178 = vset.pattern.permute.xlu0 0
    %179 = vperm.xlu0 %178, %v101
    %v180 = vpop.permute.xlu0 %179
    %183 = vset.pattern.permute.xlu0 0
    %184 = vperm.xlu0 %183, %v102
    %v185 = vpop.permute.xlu0 %184
    %188 = vset.pattern.permute.xlu0 0
    %189 = vperm.xlu0 %188, %v103
    %v190 = vpop.permute.xlu0 %189
    %193 = vset.pattern.permute.xlu0 0
    %194 = vperm.xlu0 %193, %v104
    %v195 = vpop.permute.xlu0 %194
    %198 = vset.pattern.permute.xlu0 0
    %199 = vperm.xlu0 %198, %v105
    %v200 = vpop.permute.xlu0 %199
    %203 = vset.pattern.permute.xlu0 0
    %204 = vperm.xlu0 %203, %v106
    %v205 = vpop.permute.xlu0 %204
    %208 = vset.pattern.permute.xlu0 0
    %209 = vperm.xlu0 %208, %v107
    %v210 = vpop.permute.xlu0 %209
    %213 = vset.pattern.permute.xlu0 0
    %214 = vperm.xlu0 %213, %v108
    %v215 = vpop.permute.xlu0 %214
    %218 = vset.pattern.permute.xlu0 0
    %219 = vperm.xlu0 %218, %v109
    %v220 = vpop.permute.xlu0 %219
    %223 = vset.pattern.permute.xlu0 0
    %224 = vperm.xlu0 %223, %v110
    %v225 = vpop.permute.xlu0 %224
    %228 = vset.pattern.permute.xlu0 0
    %229 = vperm.xlu0 %228, %v111
    %v230 = vpop.permute.xlu0 %229
    %233 = vset.pattern.permute.xlu0 0
    %234 = vperm.xlu0 %233, %v112
    %v235 = vpop.permute.xlu0 %234
    %238 = vset.pattern.permute.xlu0 0
    %239 = vperm.xlu0 %238, %v113
    %v240 = vpop.permute.xlu0 %239
    %243 = vset.pattern.permute.xlu0 0
    %244 = vperm.xlu0 %243, %v114
    %v245 = vpop.permute.xlu0 %244
    %248 = vset.pattern.permute.xlu0 0
    %249 = vperm.xlu0 %248, %v115
    %v250 = vpop.permute.xlu0 %249
    %253 = vset.pattern.permute.xlu0 0
    %254 = vperm.xlu0 %253, %v116
    %v255 = vpop.permute.xlu0 %254
    %258 = vset.pattern.permute.xlu0 0
    %259 = vperm.xlu0 %258, %v117
    %v260 = vpop.permute.xlu0 %259
    %263 = vset.pattern.permute.xlu0 0
    %264 = vperm.xlu0 %263, %v118
    %v265 = vpop.permute.xlu0 %264
    %268 = vset.pattern.permute.xlu0 0
    %269 = vperm.xlu0 %268, %v119
    %v270 = vpop.permute.xlu0 %269
    %273 = vset.pattern.permute.xlu0 0
    %274 = vperm.xlu0 %273, %v120
    %v275 = vpop.permute.xlu0 %274
    %278 = vset.pattern.permute.xlu0 0
    %279 = vperm.xlu0 %278, %v121
    %v280 = vpop.permute.xlu0 %279
    %v282 = vadd.f32 %v58, %v125
    %v283 = vadd.f32 %v59, %v130
    %v284 = vadd.f32 %v60, %v135
    %v285 = vadd.f32 %v61, %v140
    %v286 = vadd.f32 %v62, %v145
    %v287 = vadd.f32 %v63, %v150
    %v288 = vadd.f32 %v64, %v155
    %v289 = vadd.f32 %v65, %v160
    %v290 = vadd.f32 %v66, %v165
    %v291 = vadd.f32 %v67, %v170
    %v292 = vadd.f32 %v68, %v175
    %v293 = vadd.f32 %v69, %v180
    %v294 = vadd.f32 %v70, %v185
    %v295 = vadd.f32 %v71, %v190
    %v296 = vadd.f32 %v72, %v195
    %v297 = vadd.f32 %v73, %v200
    %v298 = vadd.f32 %v74, %v205
    %v299 = vadd.f32 %v75, %v210
    %v300 = vadd.f32 %v76, %v215
    %v301 = vadd.f32 %v77, %v220
    %v302 = vadd.f32 %v78, %v225
    %v303 = vadd.f32 %v79, %v230
    %v304 = vadd.f32 %v80, %v235
    %v305 = vadd.f32 %v81, %v240
    %v306 = vadd.f32 %v82, %v245
    %v307 = vadd.f32 %v83, %v250
    %v308 = vadd.f32 %v84, %v255
    %v309 = vadd.f32 %v85, %v260
    %v310 = vadd.f32 %v86, %v265
    %v311 = vadd.f32 %v87, %v270
    %v312 = vadd.f32 %v88, %v275
    %v313 = vadd.f32 %v89, %v280
    %314 = vset.pattern.permute.xlu0 1
    %315 = vperm.xlu0 %314, %v90
    %v316 = vpop.permute.xlu0 %315
    %318 = vset.pattern.permute.xlu0 1
    %319 = vperm.xlu0 %318, %v91
    %v320 = vpop.permute.xlu0 %319
    %322 = vset.pattern.permute.xlu0 1
    %323 = vperm.xlu0 %322, %v92
    %v324 = vpop.permute.xlu0 %323
    %326 = vset.pattern.permute.xlu0 1
    %327 = vperm.xlu0 %326, %v93
    %v328 = vpop.permute.xlu0 %327
    %330 = vset.pattern.permute.xlu0 1
    %331 = vperm.xlu0 %330, %v94
    %v332 = vpop.permute.xlu0 %331
    %334 = vset.pattern.permute.xlu0 1
    %335 = vperm.xlu0 %334, %v95
    %v336 = vpop.permute.xlu0 %335
    %338 = vset.pattern.permute.xlu0 1
    %339 = vperm.xlu0 %338, %v96
    %v340 = vpop.permute.xlu0 %339
    %342 = vset.pattern.permute.xlu0 1
    %343 = vperm.xlu0 %342, %v97
    %v344 = vpop.permute.xlu0 %343
    %346 = vset.pattern.permute.xlu0 1
    %347 = vperm.xlu0 %346, %v98
    %v348 = vpop.permute.xlu0 %347
    %350 = vset.pattern.permute.xlu0 1
    %351 = vperm.xlu0 %350, %v99
    %v352 = vpop.permute.xlu0 %351
    %354 = vset.pattern.permute.xlu0 1
    %355 = vperm.xlu0 %354, %v100
    %v356 = vpop.permute.xlu0 %355
    %358 = vset.pattern.permute.xlu0 1
    %359 = vperm.xlu0 %358, %v101
    %v360 = vpop.permute.xlu0 %359
    %362 = vset.pattern.permute.xlu0 1
    %363 = vperm.xlu0 %362, %v102
    %v364 = vpop.permute.xlu0 %363
    %366 = vset.pattern.permute.xlu0 1
    %367 = vperm.xlu0 %366, %v103
    %v368 = vpop.permute.xlu0 %367
    %370 = vset.pattern.permute.xlu0 1
    %371 = vperm.xlu0 %370, %v104
    %v372 = vpop.permute.xlu0 %371
    %374 = vset.pattern.permute.xlu0 1
    %375 = vperm.xlu0 %374, %v105
    %v376 = vpop.permute.xlu0 %375
    %378 = vset.pattern.permute.xlu0 1
    %379 = vperm.xlu0 %378, %v106
    %v380 = vpop.permute.xlu0 %379
    %382 = vset.pattern.permute.xlu0 1
    %383 = vperm.xlu0 %382, %v107
    %v384 = vpop.permute.xlu0 %383
    %386 = vset.pattern.permute.xlu0 1
    %387 = vperm.xlu0 %386, %v108
    %v388 = vpop.permute.xlu0 %387
    %390 = vset.pattern.permute.xlu0 1
    %391 = vperm.xlu0 %390, %v109
    %v392 = vpop.permute.xlu0 %391
    %394 = vset.pattern.permute.xlu0 1
    %395 = vperm.xlu0 %394, %v110
    %v396 = vpop.permute.xlu0 %395
    %398 = vset.pattern.permute.xlu0 1
    %399 = vperm.xlu0 %398, %v111
    %v400 = vpop.permute.xlu0 %399
    %402 = vset.pattern.permute.xlu0 1
    %403 = vperm.xlu0 %402, %v112
    %v404 = vpop.permute.xlu0 %403
    %406 = vset.pattern.permute.xlu0 1
    %407 = vperm.xlu0 %406, %v113
    %v408 = vpop.permute.xlu0 %407
    %410 = vset.pattern.permute.xlu0 1
    %411 = vperm.xlu0 %410, %v114
    %v412 = vpop.permute.xlu0 %411
    %414 = vset.pattern.permute.xlu0 1
    %415 = vperm.xlu0 %414, %v115
    %v416 = vpop.permute.xlu0 %415
    %418 = vset.pattern.permute.xlu0 1
    %419 = vperm.xlu0 %418, %v116
    %v420 = vpop.permute.xlu0 %419
    %422 = vset.pattern.permute.xlu0 1
    %423 = vperm.xlu0 %422, %v117
    %v424 = vpop.permute.xlu0 %423
    %426 = vset.pattern.permute.xlu0 1
    %427 = vperm.xlu0 %426, %v118
    %v428 = vpop.permute.xlu0 %427
    %430 = vset.pattern.permute.xlu0 1
    %431 = vperm.xlu0 %430, %v119
    %v432 = vpop.permute.xlu0 %431
    %434 = vset.pattern.permute.xlu0 1
    %435 = vperm.xlu0 %434, %v120
    %v436 = vpop.permute.xlu0 %435
    %438 = vset.pattern.permute.xlu0 1
    %439 = vperm.xlu0 %438, %v121
    %v440 = vpop.permute.xlu0 %439
    %v442 = vadd.f32 %v58, %v316
    %v443 = vadd.f32 %v59, %v320
    %v444 = vadd.f32 %v60, %v324
    %v445 = vadd.f32 %v61, %v328
    %v446 = vadd.f32 %v62, %v332
    %v447 = vadd.f32 %v63, %v336
    %v448 = vadd.f32 %v64, %v340
    %v449 = vadd.f32 %v65, %v344
    %v450 = vadd.f32 %v66, %v348
    %v451 = vadd.f32 %v67, %v352
    %v452 = vadd.f32 %v68, %v356
    %v453 = vadd.f32 %v69, %v360
    %v454 = vadd.f32 %v70, %v364
    %v455 = vadd.f32 %v71, %v368
    %v456 = vadd.f32 %v72, %v372
    %v457 = vadd.f32 %v73, %v376
    %v458 = vadd.f32 %v74, %v380
    %v459 = vadd.f32 %v75, %v384
    %v460 = vadd.f32 %v76, %v388
    %v461 = vadd.f32 %v77, %v392
    %v462 = vadd.f32 %v78, %v396
    %v463 = vadd.f32 %v79, %v400
    %v464 = vadd.f32 %v80, %v404
    %v465 = vadd.f32 %v81, %v408
    %v466 = vadd.f32 %v82, %v412
    %v467 = vadd.f32 %v83, %v416
    %v468 = vadd.f32 %v84, %v420
    %v469 = vadd.f32 %v85, %v424
    %v470 = vadd.f32 %v86, %v428
    %v471 = vadd.f32 %v87, %v432
    %v472 = vadd.f32 %v88, %v436
    %v473 = vadd.f32 %v89, %v440
    %v474 = vld [vmem:[%s2] sm:$0xf]
    %v475 = vld [vmem:[%s2 + $0x4] sm:$0xf]
    %v476 = vld [vmem:[%s2 + $0x8] sm:$0xf]
    %v477 = vld [vmem:[%s2 + $0xc] sm:$0xf]
    %v478 = vld [vmem:[%s2 + $0x10] sm:$0xf]
    %v479 = vld [vmem:[%s2 + $0x14] sm:$0xf]
    %v480 = vld [vmem:[%s2 + $0x18] sm:$0xf]
    %v481 = vld [vmem:[%s2 + $0x1c] sm:$0xf]
    %v482 = vld [vmem:[%s2 + $0x20] sm:$0xf]
    %v483 = vld [vmem:[%s2 + $0x24] sm:$0xf]
    %v484 = vld [vmem:[%s2 + $0x28] sm:$0xf]
    %v485 = vld [vmem:[%s2 + $0x2c] sm:$0xf]
    %v486 = vld [vmem:[%s2 + $0x30] sm:$0xf]
    %v487 = vld [vmem:[%s2 + $0x34] sm:$0xf]
    %v488 = vld [vmem:[%s2 + $0x38] sm:$0xf]
    %v489 = vld [vmem:[%s2 + $0x3c] sm:$0xf]
    %v490 = vld [vmem:[%s2 + $0x40] sm:$0xf]
    %v491 = vld [vmem:[%s2 + $0x44] sm:$0xf]
    %v492 = vld [vmem:[%s2 + $0x48] sm:$0xf]
    %v493 = vld [vmem:[%s2 + $0x4c] sm:$0xf]
    %v494 = vld [vmem:[%s2 + $0x50] sm:$0xf]
    %v495 = vld [vmem:[%s2 + $0x54] sm:$0xf]
    %v496 = vld [vmem:[%s2 + $0x58] sm:$0xf]
    %v497 = vld [vmem:[%s2 + $0x5c] sm:$0xf]
    %v498 = vld [vmem:[%s2 + $0x60] sm:$0xf]
    %v499 = vld [vmem:[%s2 + $0x64] sm:$0xf]
    %v500 = vld [vmem:[%s2 + $0x68] sm:$0xf]
    %v501 = vld [vmem:[%s2 + $0x6c] sm:$0xf]
    %v502 = vld [vmem:[%s2 + $0x70] sm:$0xf]
    %v503 = vld [vmem:[%s2 + $0x74] sm:$0xf]
    %v504 = vld [vmem:[%s2 + $0x78] sm:$0xf]
    %v505 = vld [vmem:[%s2 + $0x7c] sm:$0xf]
    %v506 = vld [vmem:[%s3] sm:$0xf]
    %v507 = vld [vmem:[%s3 + $0x4] sm:$0xf]
    %v508 = vld [vmem:[%s3 + $0x8] sm:$0xf]
    %v509 = vld [vmem:[%s3 + $0xc] sm:$0xf]
    %v510 = vld [vmem:[%s4] sm:$0x1]
    %v512 = vlaneseq
    %v513 = vshrl.u32 %v512, 7
    %v514 = vsub.s32 0, %v513
    %v515 = vrot.slane %v510, %v514
    %v549 = vunpack.c.l.b16 %v474
    %v550 = vunpack.c.l.b16 %v475
    %v551 = vunpack.c.l.b16 %v476
    %v552 = vunpack.c.l.b16 %v477
    %v553 = vunpack.c.l.b16 %v478
    %v554 = vunpack.c.l.b16 %v479
    %v555 = vunpack.c.l.b16 %v480
    %v556 = vunpack.c.l.b16 %v481
    %v557 = vunpack.c.l.b16 %v482
    %v558 = vunpack.c.l.b16 %v483
    %v559 = vunpack.c.l.b16 %v484
    %v560 = vunpack.c.l.b16 %v485
    %v561 = vunpack.c.l.b16 %v486
    %v562 = vunpack.c.l.b16 %v487
    %v563 = vunpack.c.l.b16 %v488
    %v564 = vunpack.c.l.b16 %v489
    %v565 = vunpack.c.l.b16 %v490
    %v566 = vunpack.c.l.b16 %v491
    %v567 = vunpack.c.l.b16 %v492
    %v568 = vunpack.c.l.b16 %v493
    %v569 = vunpack.c.l.b16 %v494
    %v570 = vunpack.c.l.b16 %v495
    %v571 = vunpack.c.l.b16 %v496
    %v572 = vunpack.c.l.b16 %v497
    %v573 = vunpack.c.l.b16 %v498
    %v574 = vunpack.c.l.b16 %v499
    %v575 = vunpack.c.l.b16 %v500
    %v576 = vunpack.c.l.b16 %v501
    %v577 = vunpack.c.l.b16 %v502
    %v578 = vunpack.c.l.b16 %v503
    %v579 = vunpack.c.l.b16 %v504
    %v580 = vunpack.c.l.b16 %v505
    %v581 = vpack.c.b16 %v550, %v549
    %v582 = vpack.c.b16 %v552, %v551
    %v583 = vpack.c.b16 %v554, %v553
    %v584 = vpack.c.b16 %v556, %v555
    %v585 = vpack.c.b16 %v558, %v557
    %v586 = vpack.c.b16 %v560, %v559
    %v587 = vpack.c.b16 %v562, %v561
    %v588 = vpack.c.b16 %v564, %v563
    %v589 = vpack.c.b16 %v566, %v565
    %v590 = vpack.c.b16 %v568, %v567
    %v591 = vpack.c.b16 %v570, %v569
    %v592 = vpack.c.b16 %v572, %v571
    %v593 = vpack.c.b16 %v574, %v573
    %v594 = vpack.c.b16 %v576, %v575
    %v595 = vpack.c.b16 %v578, %v577
    %v596 = vpack.c.b16 %v580, %v579
    %v601 = vunpack.c.l.b16 %v506
    %v602 = vunpack.c.l.b16 %v507
    %v603 = vunpack.c.l.b16 %v508
    %v604 = vunpack.c.l.b16 %v509
    %v605 = vpack.c.b16 %v602, %v601
    %v606 = vpack.c.b16 %v604, %v603
    %vm609 = vcmask 261120
    %v611 = vsel %vm609, %v581, 0
    %v614 = vsel %vm609, %v582, 0
    %v617 = vsel %vm609, %v583, 0
    %v620 = vsel %vm609, %v584, 0
    %v623 = vsel %vm609, %v585, 0
    %v626 = vsel %vm609, %v586, 0
    %v629 = vsel %vm609, %v587, 0
    %v632 = vsel %vm609, %v588, 0
    %v635 = vsel %vm609, %v589, 0
    %v638 = vsel %vm609, %v590, 0
    %v641 = vsel %vm609, %v591, 0
    %v644 = vsel %vm609, %v592, 0
    %v647 = vsel %vm609, %v593, 0
    %v650 = vsel %vm609, %v594, 0
    %v653 = vsel %vm609, %v595, 0
    %v656 = vsel %vm609, %v596, 0
    %658 = vmatprep.subr.bf16.mxu0 0
    %659 = vmatpush1.bf16.msra.mxu0 0
    %660 = vmatprep.subr.bf16.mxu0 0
    %661 = vmatpush1.bf16.msra.mxu0 0
    %662 = vmatprep.subr.bf16.mxu0 0
    %663 = vmatpush1.bf16.msra.mxu0 0
    %664 = vmatprep.subr.bf16.mxu0 0
    %665 = vmatpush1.bf16.msra.mxu0 0
    %666 = vmatprep.subr.bf16.mxu0 0
    %667 = vmatpush1.bf16.msra.mxu0 0
    %668 = vmatprep.subr.bf16.mxu0 0
    %669 = vmatpush1.bf16.msra.mxu0 0
    %670 = vmatprep.subr.bf16.mxu0 0
    %671 = vmatpush1.bf16.msra.mxu0 %v606
    %672 = vmatprep.subr.bf16.mxu0 0
    %673 = vmatpush1.bf16.msra.mxu0 %v605
    %674 = vmatprep.subr.bf16.mxu0 0
    %675 = vmatpush2.bf16.msra.mxu0 0
    %676 = vmatprep.subr.bf16.mxu0 0
    %677 = vmatpush2.bf16.msra.mxu0 0
    %678 = vmatprep.subr.bf16.mxu0 0
    %679 = vmatpush2.bf16.msra.mxu0 0
    %680 = vmatprep.subr.bf16.mxu0 0
    %681 = vmatpush2.bf16.msra.mxu0 0
    %682 = vmatprep.subr.bf16.mxu0 0
    %683 = vmatpush2.bf16.msra.mxu0 0
    %684 = vmatprep.subr.bf16.mxu0 0
    %685 = vmatpush2.bf16.msra.mxu0 0
    %686 = vmatprep.subr.bf16.mxu0 0
    %687 = vmatpush2.bf16.msra.mxu0 0
    %688 = vmatprep.subr.bf16.mxu0 0
    %689 = vmatpush2.bf16.msra.mxu0 0
    %690 = vmatprep.mubr.bf16.mxu0 0
    %691 = vmatmul.mubr.bf16.gmra.mxu0 %v611
    %v692 = vpop.f32.mrf.mxu0
    %v693 = vadd.f32 %v515, %v692
    %v694 = vpop.f32.mrf.mxu0
    %v695 = vpop.f32.mrf.mxu0
    %v696 = vadd.f32 %v515, %v695
    %v697 = vpop.f32.mrf.mxu0
    %698 = vmatprep.mubr.bf16.mxu0 0
    %699 = vmatmul.mubr.bf16.gmra.mxu0 %v614
    %v700 = vpop.f32.mrf.mxu0
    %v701 = vadd.f32 %v515, %v700
    %v702 = vpop.f32.mrf.mxu0
    %v703 = vpop.f32.mrf.mxu0
    %v704 = vadd.f32 %v515, %v703
    %v705 = vpop.f32.mrf.mxu0
    %706 = vmatprep.mubr.bf16.mxu0 0
    %707 = vmatmul.mubr.bf16.gmra.mxu0 %v617
    %v708 = vpop.f32.mrf.mxu0
    %v709 = vadd.f32 %v515, %v708
    %v710 = vpop.f32.mrf.mxu0
    %v711 = vpop.f32.mrf.mxu0
    %v712 = vadd.f32 %v515, %v711
    %v713 = vpop.f32.mrf.mxu0
    %714 = vmatprep.mubr.bf16.mxu0 0
    %715 = vmatmul.mubr.bf16.gmra.mxu0 %v620
    %v716 = vpop.f32.mrf.mxu0
    %v717 = vadd.f32 %v515, %v716
    %v718 = vpop.f32.mrf.mxu0
    %v719 = vpop.f32.mrf.mxu0
    %v720 = vadd.f32 %v515, %v719
    %v721 = vpop.f32.mrf.mxu0
    %722 = vmatprep.mubr.bf16.mxu0 0
    %723 = vmatmul.mubr.bf16.gmra.mxu0 %v623
    %v724 = vpop.f32.mrf.mxu0
    %v725 = vadd.f32 %v515, %v724
    %v726 = vpop.f32.mrf.mxu0
    %v727 = vpop.f32.mrf.mxu0
    %v728 = vadd.f32 %v515, %v727
    %v729 = vpop.f32.mrf.mxu0
    %730 = vmatprep.mubr.bf16.mxu0 0
    %731 = vmatmul.mubr.bf16.gmra.mxu0 %v626
    %v732 = vpop.f32.mrf.mxu0
    %v733 = vadd.f32 %v515, %v732
    %v734 = vpop.f32.mrf.mxu0
    %v735 = vpop.f32.mrf.mxu0
    %v736 = vadd.f32 %v515, %v735
    %v737 = vpop.f32.mrf.mxu0
    %738 = vmatprep.mubr.bf16.mxu0 0
    %739 = vmatmul.mubr.bf16.gmra.mxu0 %v629
    %v740 = vpop.f32.mrf.mxu0
    %v741 = vadd.f32 %v515, %v740
    %v742 = vpop.f32.mrf.mxu0
    %v743 = vpop.f32.mrf.mxu0
    %v744 = vadd.f32 %v515, %v743
    %v745 = vpop.f32.mrf.mxu0
    %746 = vmatprep.mubr.bf16.mxu0 0
    %747 = vmatmul.mubr.bf16.gmra.mxu0 %v632
    %v748 = vpop.f32.mrf.mxu0
    %v749 = vadd.f32 %v515, %v748
    %v750 = vpop.f32.mrf.mxu0
    %v751 = vpop.f32.mrf.mxu0
    %v752 = vadd.f32 %v515, %v751
    %v753 = vpop.f32.mrf.mxu0
    %754 = vmatprep.mubr.bf16.mxu0 0
    %755 = vmatmul.mubr.bf16.gmra.mxu0 %v635
    %v756 = vpop.f32.mrf.mxu0
    %v757 = vadd.f32 %v515, %v756
    %v758 = vpop.f32.mrf.mxu0
    %v759 = vpop.f32.mrf.mxu0
    %v760 = vadd.f32 %v515, %v759
    %v761 = vpop.f32.mrf.mxu0
    %762 = vmatprep.mubr.bf16.mxu0 0
    %763 = vmatmul.mubr.bf16.gmra.mxu0 %v638
    %v764 = vpop.f32.mrf.mxu0
    %v765 = vadd.f32 %v515, %v764
    %v766 = vpop.f32.mrf.mxu0
    %v767 = vpop.f32.mrf.mxu0
    %v768 = vadd.f32 %v515, %v767
    %v769 = vpop.f32.mrf.mxu0
    %770 = vmatprep.mubr.bf16.mxu0 0
    %771 = vmatmul.mubr.bf16.gmra.mxu0 %v641
    %v772 = vpop.f32.mrf.mxu0
    %v773 = vadd.f32 %v515, %v772
    %v774 = vpop.f32.mrf.mxu0
    %v775 = vpop.f32.mrf.mxu0
    %v776 = vadd.f32 %v515, %v775
    %v777 = vpop.f32.mrf.mxu0
    %778 = vmatprep.mubr.bf16.mxu0 0
    %779 = vmatmul.mubr.bf16.gmra.mxu0 %v644
    %v780 = vpop.f32.mrf.mxu0
    %v781 = vadd.f32 %v515, %v780
    %v782 = vpop.f32.mrf.mxu0
    %v783 = vpop.f32.mrf.mxu0
    %v784 = vadd.f32 %v515, %v783
    %v785 = vpop.f32.mrf.mxu0
    %786 = vmatprep.mubr.bf16.mxu0 0
    %787 = vmatmul.mubr.bf16.gmra.mxu0 %v647
    %v788 = vpop.f32.mrf.mxu0
    %v789 = vadd.f32 %v515, %v788
    %v790 = vpop.f32.mrf.mxu0
    %v791 = vpop.f32.mrf.mxu0
    %v792 = vadd.f32 %v515, %v791
    %v793 = vpop.f32.mrf.mxu0
    %794 = vmatprep.mubr.bf16.mxu0 0
    %795 = vmatmul.mubr.bf16.gmra.mxu0 %v650
    %v796 = vpop.f32.mrf.mxu0
    %v797 = vadd.f32 %v515, %v796
    %v798 = vpop.f32.mrf.mxu0
    %v799 = vpop.f32.mrf.mxu0
    %v800 = vadd.f32 %v515, %v799
    %v801 = vpop.f32.mrf.mxu0
    %802 = vmatprep.mubr.bf16.mxu0 0
    %803 = vmatmul.mubr.bf16.gmra.mxu0 %v653
    %v804 = vpop.f32.mrf.mxu0
    %v805 = vadd.f32 %v515, %v804
    %v806 = vpop.f32.mrf.mxu0
    %v807 = vpop.f32.mrf.mxu0
    %v808 = vadd.f32 %v515, %v807
    %v809 = vpop.f32.mrf.mxu0
    %810 = vmatprep.mubr.bf16.mxu0 0
    %811 = vmatmul.mubr.bf16.gmra.mxu0 %v656
    %v812 = vpop.f32.mrf.mxu0
    %v813 = vadd.f32 %v515, %v812
    %v814 = vpop.f32.mrf.mxu0
    %v815 = vpop.f32.mrf.mxu0
    %v816 = vadd.f32 %v515, %v815
    %v817 = vpop.f32.mrf.mxu0
    %818 = vdwg.mxu0
    %851 = vrot.lane.b32.xlu0 %v442, 96
    %v852 = vpop.permute.xlu0 %851
    %853 = vrot.lane.b32.xlu0 %v443, 96
    %v854 = vpop.permute.xlu0 %853
    %855 = vrot.lane.b32.xlu0 %v444, 96
    %v856 = vpop.permute.xlu0 %855
    %857 = vrot.lane.b32.xlu0 %v445, 96
    %v858 = vpop.permute.xlu0 %857
    %859 = vrot.lane.b32.xlu0 %v446, 96
    %v860 = vpop.permute.xlu0 %859
    %861 = vrot.lane.b32.xlu0 %v447, 96
    %v862 = vpop.permute.xlu0 %861
    %863 = vrot.lane.b32.xlu0 %v448, 96
    %v864 = vpop.permute.xlu0 %863
    %865 = vrot.lane.b32.xlu0 %v449, 96
    %v866 = vpop.permute.xlu0 %865
    %867 = vrot.lane.b32.xlu0 %v450, 96
    %v868 = vpop.permute.xlu0 %867
    %869 = vrot.lane.b32.xlu0 %v451, 96
    %v870 = vpop.permute.xlu0 %869
    %871 = vrot.lane.b32.xlu0 %v452, 96
    %v872 = vpop.permute.xlu0 %871
    %873 = vrot.lane.b32.xlu0 %v453, 96
    %v874 = vpop.permute.xlu0 %873
    %875 = vrot.lane.b32.xlu0 %v454, 96
    %v876 = vpop.permute.xlu0 %875
    %877 = vrot.lane.b32.xlu0 %v455, 96
    %v878 = vpop.permute.xlu0 %877
    %879 = vrot.lane.b32.xlu0 %v456, 96
    %v880 = vpop.permute.xlu0 %879
    %881 = vrot.lane.b32.xlu0 %v457, 96
    %v882 = vpop.permute.xlu0 %881
    %883 = vrot.lane.b32.xlu0 %v458, 96
    %v884 = vpop.permute.xlu0 %883
    %885 = vrot.lane.b32.xlu0 %v459, 96
    %v886 = vpop.permute.xlu0 %885
    %887 = vrot.lane.b32.xlu0 %v460, 96
    %v888 = vpop.permute.xlu0 %887
    %889 = vrot.lane.b32.xlu0 %v461, 96
    %v890 = vpop.permute.xlu0 %889
    %891 = vrot.lane.b32.xlu0 %v462, 96
    %v892 = vpop.permute.xlu0 %891
    %893 = vrot.lane.b32.xlu0 %v463, 96
    %v894 = vpop.permute.xlu0 %893
    %895 = vrot.lane.b32.xlu0 %v464, 96
    %v896 = vpop.permute.xlu0 %895
    %897 = vrot.lane.b32.xlu0 %v465, 96
    %v898 = vpop.permute.xlu0 %897
    %899 = vrot.lane.b32.xlu0 %v466, 96
    %v900 = vpop.permute.xlu0 %899
    %901 = vrot.lane.b32.xlu0 %v467, 96
    %v902 = vpop.permute.xlu0 %901
    %903 = vrot.lane.b32.xlu0 %v468, 96
    %v904 = vpop.permute.xlu0 %903
    %905 = vrot.lane.b32.xlu0 %v469, 96
    %v906 = vpop.permute.xlu0 %905
    %907 = vrot.lane.b32.xlu0 %v470, 96
    %v908 = vpop.permute.xlu0 %907
    %909 = vrot.lane.b32.xlu0 %v471, 96
    %v910 = vpop.permute.xlu0 %909
    %911 = vrot.lane.b32.xlu0 %v472, 96
    %v912 = vpop.permute.xlu0 %911
    %913 = vrot.lane.b32.xlu0 %v473, 96
    %v914 = vpop.permute.xlu0 %913
    %v947 = vmul.f32 %v282, %v852
    %v948 = vmul.f32 %v283, %v854
    %v949 = vmul.f32 %v284, %v856
    %v950 = vmul.f32 %v285, %v858
    %v951 = vmul.f32 %v286, %v860
    %v952 = vmul.f32 %v287, %v862
    %v953 = vmul.f32 %v288, %v864
    %v954 = vmul.f32 %v289, %v866
    %v955 = vmul.f32 %v290, %v868
    %v956 = vmul.f32 %v291, %v870
    %v957 = vmul.f32 %v292, %v872
    %v958 = vmul.f32 %v293, %v874
    %v959 = vmul.f32 %v294, %v876
    %v960 = vmul.f32 %v295, %v878
    %v961 = vmul.f32 %v296, %v880
    %v962 = vmul.f32 %v297, %v882
    %v963 = vmul.f32 %v298, %v884
    %v964 = vmul.f32 %v299, %v886
    %v965 = vmul.f32 %v300, %v888
    %v966 = vmul.f32 %v301, %v890
    %v967 = vmul.f32 %v302, %v892
    %v968 = vmul.f32 %v303, %v894
    %v969 = vmul.f32 %v304, %v896
    %v970 = vmul.f32 %v305, %v898
    %v971 = vmul.f32 %v306, %v900
    %v972 = vmul.f32 %v307, %v902
    %v973 = vmul.f32 %v308, %v904
    %v974 = vmul.f32 %v309, %v906
    %v975 = vmul.f32 %v310, %v908
    %v976 = vmul.f32 %v311, %v910
    %v977 = vmul.f32 %v312, %v912
    %v978 = vmul.f32 %v313, %v914
    %v979 = vmul.f32 %v282, %v693
    %v980 = vmul.f32 %v283, %v696
    %v981 = vmul.f32 %v284, %v701
    %v982 = vmul.f32 %v285, %v704
    %v983 = vmul.f32 %v286, %v709
    %v984 = vmul.f32 %v287, %v712
    %v985 = vmul.f32 %v288, %v717
    %v986 = vmul.f32 %v289, %v720
    %v987 = vmul.f32 %v290, %v725
    %v988 = vmul.f32 %v291, %v728
    %v989 = vmul.f32 %v292, %v733
    %v990 = vmul.f32 %v293, %v736
    %v991 = vmul.f32 %v294, %v741
    %v992 = vmul.f32 %v295, %v744
    %v993 = vmul.f32 %v296, %v749
    %v994 = vmul.f32 %v297, %v752
    %v995 = vmul.f32 %v298, %v757
    %v996 = vmul.f32 %v299, %v760
    %v997 = vmul.f32 %v300, %v765
    %v998 = vmul.f32 %v301, %v768
    %v999 = vmul.f32 %v302, %v773
    %v1000 = vmul.f32 %v303, %v776
    %v1001 = vmul.f32 %v304, %v781
    %v1002 = vmul.f32 %v305, %v784
    %v1003 = vmul.f32 %v306, %v789
    %v1004 = vmul.f32 %v307, %v792
    %v1005 = vmul.f32 %v308, %v797
    %v1006 = vmul.f32 %v309, %v800
    %v1007 = vmul.f32 %v310, %v805
    %v1008 = vmul.f32 %v311, %v808
    %v1009 = vmul.f32 %v312, %v813
    %v1010 = vmul.f32 %v313, %v816
    %v1011 = vadd.f32 %v947, %v979
    %v1012 = vadd.f32 %v948, %v980
    %v1013 = vadd.f32 %v949, %v981
    %v1014 = vadd.f32 %v950, %v982
    %v1015 = vadd.f32 %v951, %v983
    %v1016 = vadd.f32 %v952, %v984
    %v1017 = vadd.f32 %v953, %v985
    %v1018 = vadd.f32 %v954, %v986
    %v1019 = vadd.f32 %v955, %v987
    %v1020 = vadd.f32 %v956, %v988
    %v1021 = vadd.f32 %v957, %v989
    %v1022 = vadd.f32 %v958, %v990
    %v1023 = vadd.f32 %v959, %v991
    %v1024 = vadd.f32 %v960, %v992
    %v1025 = vadd.f32 %v961, %v993
    %v1026 = vadd.f32 %v962, %v994
    %v1027 = vadd.f32 %v963, %v995
    %v1028 = vadd.f32 %v964, %v996
    %v1029 = vadd.f32 %v965, %v997
    %v1030 = vadd.f32 %v966, %v998
    %v1031 = vadd.f32 %v967, %v999
    %v1032 = vadd.f32 %v968, %v1000
    %v1033 = vadd.f32 %v969, %v1001
    %v1034 = vadd.f32 %v970, %v1002
    %v1035 = vadd.f32 %v971, %v1003
    %v1036 = vadd.f32 %v972, %v1004
    %v1037 = vadd.f32 %v973, %v1005
    %v1038 = vadd.f32 %v974, %v1006
    %v1039 = vadd.f32 %v975, %v1007
    %v1040 = vadd.f32 %v976, %v1008
    %v1041 = vadd.f32 %v977, %v1009
    %v1042 = vadd.f32 %v978, %v1010
    %v1043 = vmul.f32 %v442, %v693
    %v1044 = vmul.f32 %v443, %v696
    %v1045 = vmul.f32 %v444, %v701
    %v1046 = vmul.f32 %v445, %v704
    %v1047 = vmul.f32 %v446, %v709
    %v1048 = vmul.f32 %v447, %v712
    %v1049 = vmul.f32 %v448, %v717
    %v1050 = vmul.f32 %v449, %v720
    %v1051 = vmul.f32 %v450, %v725
    %v1052 = vmul.f32 %v451, %v728
    %v1053 = vmul.f32 %v452, %v733
    %v1054 = vmul.f32 %v453, %v736
    %v1055 = vmul.f32 %v454, %v741
    %v1056 = vmul.f32 %v455, %v744
    %v1057 = vmul.f32 %v456, %v749
    %v1058 = vmul.f32 %v457, %v752
    %v1059 = vmul.f32 %v458, %v757
    %v1060 = vmul.f32 %v459, %v760
    %v1061 = vmul.f32 %v460, %v765
    %v1062 = vmul.f32 %v461, %v768
    %v1063 = vmul.f32 %v462, %v773
    %v1064 = vmul.f32 %v463, %v776
    %v1065 = vmul.f32 %v464, %v781
    %v1066 = vmul.f32 %v465, %v784
    %v1067 = vmul.f32 %v466, %v789
    %v1068 = vmul.f32 %v467, %v792
    %v1069 = vmul.f32 %v468, %v797
    %v1070 = vmul.f32 %v469, %v800
    %v1071 = vmul.f32 %v470, %v805
    %v1072 = vmul.f32 %v471, %v808
    %v1073 = vmul.f32 %v472, %v813
    %v1074 = vmul.f32 %v473, %v816
    %1107 = vrot.lane.b32.xlu0 %v1043, 96
    %v1108 = vpop.permute.xlu0 %1107
    %1109 = vrot.lane.b32.xlu0 %v1044, 96
    %v1110 = vpop.permute.xlu0 %1109
    %1111 = vrot.lane.b32.xlu0 %v1045, 96
    %v1112 = vpop.permute.xlu0 %1111
    %1113 = vrot.lane.b32.xlu0 %v1046, 96
    %v1114 = vpop.permute.xlu0 %1113
    %1115 = vrot.lane.b32.xlu0 %v1047, 96
    %v1116 = vpop.permute.xlu0 %1115
    %1117 = vrot.lane.b32.xlu0 %v1048, 96
    %v1118 = vpop.permute.xlu0 %1117
    %1119 = vrot.lane.b32.xlu0 %v1049, 96
    %v1120 = vpop.permute.xlu0 %1119
    %1121 = vrot.lane.b32.xlu0 %v1050, 96
    %v1122 = vpop.permute.xlu0 %1121
    %1123 = vrot.lane.b32.xlu0 %v1051, 96
    %v1124 = vpop.permute.xlu0 %1123
    %1125 = vrot.lane.b32.xlu0 %v1052, 96
    %v1126 = vpop.permute.xlu0 %1125
    %1127 = vrot.lane.b32.xlu0 %v1053, 96
    %v1128 = vpop.permute.xlu0 %1127
    %1129 = vrot.lane.b32.xlu0 %v1054, 96
    %v1130 = vpop.permute.xlu0 %1129
    %1131 = vrot.lane.b32.xlu0 %v1055, 96
    %v1132 = vpop.permute.xlu0 %1131
    %1133 = vrot.lane.b32.xlu0 %v1056, 96
    %v1134 = vpop.permute.xlu0 %1133
    %1135 = vrot.lane.b32.xlu0 %v1057, 96
    %v1136 = vpop.permute.xlu0 %1135
    %1137 = vrot.lane.b32.xlu0 %v1058, 96
    %v1138 = vpop.permute.xlu0 %1137
    %1139 = vrot.lane.b32.xlu0 %v1059, 96
    %v1140 = vpop.permute.xlu0 %1139
    %1141 = vrot.lane.b32.xlu0 %v1060, 96
    %v1142 = vpop.permute.xlu0 %1141
    %1143 = vrot.lane.b32.xlu0 %v1061, 96
    %v1144 = vpop.permute.xlu0 %1143
    %1145 = vrot.lane.b32.xlu0 %v1062, 96
    %v1146 = vpop.permute.xlu0 %1145
    %1147 = vrot.lane.b32.xlu0 %v1063, 96
    %v1148 = vpop.permute.xlu0 %1147
    %1149 = vrot.lane.b32.xlu0 %v1064, 96
    %v1150 = vpop.permute.xlu0 %1149
    %1151 = vrot.lane.b32.xlu0 %v1065, 96
    %v1152 = vpop.permute.xlu0 %1151
    %1153 = vrot.lane.b32.xlu0 %v1066, 96
    %v1154 = vpop.permute.xlu0 %1153
    %1155 = vrot.lane.b32.xlu0 %v1067, 96
    %v1156 = vpop.permute.xlu0 %1155
    %1157 = vrot.lane.b32.xlu0 %v1068, 96
    %v1158 = vpop.permute.xlu0 %1157
    %1159 = vrot.lane.b32.xlu0 %v1069, 96
    %v1160 = vpop.permute.xlu0 %1159
    %1161 = vrot.lane.b32.xlu0 %v1070, 96
    %v1162 = vpop.permute.xlu0 %1161
    %1163 = vrot.lane.b32.xlu0 %v1071, 96
    %v1164 = vpop.permute.xlu0 %1163
    %1165 = vrot.lane.b32.xlu0 %v1072, 96
    %v1166 = vpop.permute.xlu0 %1165
    %1167 = vrot.lane.b32.xlu0 %v1073, 96
    %v1168 = vpop.permute.xlu0 %1167
    %1169 = vrot.lane.b32.xlu0 %v1074, 96
    %v1170 = vpop.permute.xlu0 %1169
    %v1203 = vadd.f32 %v1011, %v1108
    %v1204 = vadd.f32 %v1012, %v1110
    %v1205 = vadd.f32 %v1013, %v1112
    %v1206 = vadd.f32 %v1014, %v1114
    %v1207 = vadd.f32 %v1015, %v1116
    %v1208 = vadd.f32 %v1016, %v1118
    %v1209 = vadd.f32 %v1017, %v1120
    %v1210 = vadd.f32 %v1018, %v1122
    %v1211 = vadd.f32 %v1019, %v1124
    %v1212 = vadd.f32 %v1020, %v1126
    %v1213 = vadd.f32 %v1021, %v1128
    %v1214 = vadd.f32 %v1022, %v1130
    %v1215 = vadd.f32 %v1023, %v1132
    %v1216 = vadd.f32 %v1024, %v1134
    %v1217 = vadd.f32 %v1025, %v1136
    %v1218 = vadd.f32 %v1026, %v1138
    %v1219 = vadd.f32 %v1027, %v1140
    %v1220 = vadd.f32 %v1028, %v1142
    %v1221 = vadd.f32 %v1029, %v1144
    %v1222 = vadd.f32 %v1030, %v1146
    %v1223 = vadd.f32 %v1031, %v1148
    %v1224 = vadd.f32 %v1032, %v1150
    %v1225 = vadd.f32 %v1033, %v1152
    %v1226 = vadd.f32 %v1034, %v1154
    %v1227 = vadd.f32 %v1035, %v1156
    %v1228 = vadd.f32 %v1036, %v1158
    %v1229 = vadd.f32 %v1037, %v1160
    %v1230 = vadd.f32 %v1038, %v1162
    %v1231 = vadd.f32 %v1039, %v1164
    %v1232 = vadd.f32 %v1040, %v1166
    %v1233 = vadd.f32 %v1041, %v1168
    %v1234 = vadd.f32 %v1042, %v1170
    %s1235 = sld [smem:[#allocation2]]
    %v1236 = vstv %s1235
    %v1238 = vsel %vm609, 1.0, 0
    %v1241 = vsel %vm609, %v1203, 0
    %v1244 = vsel %vm609, %v1204, 0
    %v1247 = vsel %vm609, %v1205, 0
    %v1250 = vsel %vm609, %v1206, 0
    %v1253 = vsel %vm609, %v1207, 0
    %v1256 = vsel %vm609, %v1208, 0
    %v1259 = vsel %vm609, %v1209, 0
    %v1262 = vsel %vm609, %v1210, 0
    %v1265 = vsel %vm609, %v1211, 0
    %v1268 = vsel %vm609, %v1212, 0
    %v1271 = vsel %vm609, %v1213, 0
    %v1274 = vsel %vm609, %v1214, 0
    %v1277 = vsel %vm609, %v1215, 0
    %v1280 = vsel %vm609, %v1216, 0
    %v1283 = vsel %vm609, %v1217, 0
    %v1286 = vsel %vm609, %v1218, 0
    %v1289 = vsel %vm609, %v1219, 0
    %v1292 = vsel %vm609, %v1220, 0
    %v1295 = vsel %vm609, %v1221, 0
    %v1298 = vsel %vm609, %v1222, 0
    %v1301 = vsel %vm609, %v1223, 0
    %v1304 = vsel %vm609, %v1224, 0
    %v1307 = vsel %vm609, %v1225, 0
    %v1310 = vsel %vm609, %v1226, 0
    %v1313 = vsel %vm609, %v1227, 0
    %v1316 = vsel %vm609, %v1228, 0
    %v1319 = vsel %vm609, %v1229, 0
    %v1322 = vsel %vm609, %v1230, 0
    %v1325 = vsel %vm609, %v1231, 0
    %v1328 = vsel %vm609, %v1232, 0
    %v1331 = vsel %vm609, %v1233, 0
    %v1334 = vsel %vm609, %v1234, 0
    %1336 = vmatprep.subr.mxu0 0.0
    %v1337 = vand.u32 %v1286, 4294901760
    %1338 = vmatpush1.xpose.msra.mxu0 %v1337
    %1339 = vmatprep.subr.mxu0 0.0
    %v1340 = vand.u32 %v1283, 4294901760
    %1341 = vmatpush1.xpose.msra.mxu0 %v1340
    %1342 = vmatprep.subr.mxu0 0.0
    %v1343 = vand.u32 %v1280, 4294901760
    %1344 = vmatpush1.xpose.msra.mxu0 %v1343
    %1345 = vmatprep.subr.mxu0 0.0
    %v1346 = vand.u32 %v1277, 4294901760
    %1347 = vmatpush1.xpose.msra.mxu0 %v1346
    %1348 = vmatprep.subr.mxu0 0.0
    %v1349 = vand.u32 %v1274, 4294901760
    %1350 = vmatpush1.xpose.msra.mxu0 %v1349
    %1351 = vmatprep.subr.mxu0 0.0
    %v1352 = vand.u32 %v1271, 4294901760
    %1353 = vmatpush1.xpose.msra.mxu0 %v1352
    %1354 = vmatprep.subr.mxu0 0.0
    %v1355 = vand.u32 %v1268, 4294901760
    %1356 = vmatpush1.xpose.msra.mxu0 %v1355
    %1357 = vmatprep.subr.mxu0 0.0
    %v1358 = vand.u32 %v1265, 4294901760
    %1359 = vmatpush1.xpose.msra.mxu0 %v1358
    %1360 = vmatprep.subr.mxu0 0.0
    %v1361 = vand.u32 %v1262, 4294901760
    %1362 = vmatpush1.xpose.msra.mxu0 %v1361
    %1363 = vmatprep.subr.mxu0 0.0
    %v1364 = vand.u32 %v1259, 4294901760
    %1365 = vmatpush1.xpose.msra.mxu0 %v1364
    %1366 = vmatprep.subr.mxu0 0.0
    %v1367 = vand.u32 %v1256, 4294901760
    %1368 = vmatpush1.xpose.msra.mxu0 %v1367
    %1369 = vmatprep.subr.mxu0 0.0
    %v1370 = vand.u32 %v1253, 4294901760
    %1371 = vmatpush1.xpose.msra.mxu0 %v1370
    %1372 = vmatprep.subr.mxu0 0.0
    %v1373 = vand.u32 %v1250, 4294901760
    %1374 = vmatpush1.xpose.msra.mxu0 %v1373
    %1375 = vmatprep.subr.mxu0 0.0
    %v1376 = vand.u32 %v1247, 4294901760
    %1377 = vmatpush1.xpose.msra.mxu0 %v1376
    %1378 = vmatprep.subr.mxu0 0.0
    %v1379 = vand.u32 %v1244, 4294901760
    %1380 = vmatpush1.xpose.msra.mxu0 %v1379
    %1381 = vmatprep.subr.mxu0 0.0
    %v1382 = vand.u32 %v1241, 4294901760
    %1383 = vmatpush1.xpose.msra.mxu0 %v1382
    %1384 = vmatprep.subr.mxu0 0.0
    %v1385 = vand.u32 %v1334, 4294901760
    %1386 = vmatpush2.xpose.msra.mxu0 %v1385
    %1387 = vmatprep.subr.mxu0 0.0
    %v1388 = vand.u32 %v1331, 4294901760
    %1389 = vmatpush2.xpose.msra.mxu0 %v1388
    %1390 = vmatprep.subr.mxu0 0.0
    %v1391 = vand.u32 %v1328, 4294901760
    %1392 = vmatpush2.xpose.msra.mxu0 %v1391
    %1393 = vmatprep.subr.mxu0 0.0
    %v1394 = vand.u32 %v1325, 4294901760
    %1395 = vmatpush2.xpose.msra.mxu0 %v1394
    %1396 = vmatprep.subr.mxu0 0.0
    %v1397 = vand.u32 %v1322, 4294901760
    %1398 = vmatpush2.xpose.msra.mxu0 %v1397
    %1399 = vmatprep.subr.mxu0 0.0
    %v1400 = vand.u32 %v1319, 4294901760
    %1401 = vmatpush2.xpose.msra.mxu0 %v1400
    %1402 = vmatprep.subr.mxu0 0.0
    %v1403 = vand.u32 %v1316, 4294901760
    %1404 = vmatpush2.xpose.msra.mxu0 %v1403
    %1405 = vmatprep.subr.mxu0 0.0
    %v1406 = vand.u32 %v1313, 4294901760
    %1407 = vmatpush2.xpose.msra.mxu0 %v1406
    %1408 = vmatprep.subr.mxu0 0.0
    %v1409 = vand.u32 %v1310, 4294901760
    %1410 = vmatpush2.xpose.msra.mxu0 %v1409
    %1411 = vmatprep.subr.mxu0 0.0
    %v1412 = vand.u32 %v1307, 4294901760
    %1413 = vmatpush2.xpose.msra.mxu0 %v1412
    %1414 = vmatprep.subr.mxu0 0.0
    %v1415 = vand.u32 %v1304, 4294901760
    %1416 = vmatpush2.xpose.msra.mxu0 %v1415
    %1417 = vmatprep.subr.mxu0 0.0
    %v1418 = vand.u32 %v1301, 4294901760
    %1419 = vmatpush2.xpose.msra.mxu0 %v1418
    %1420 = vmatprep.subr.mxu0 0.0
    %v1421 = vand.u32 %v1298, 4294901760
    %1422 = vmatpush2.xpose.msra.mxu0 %v1421
    %1423 = vmatprep.subr.mxu0 0.0
    %v1424 = vand.u32 %v1295, 4294901760
    %1425 = vmatpush2.xpose.msra.mxu0 %v1424
    %1426 = vmatprep.subr.mxu0 0.0
    %v1427 = vand.u32 %v1292, 4294901760
    %1428 = vmatpush2.xpose.msra.mxu0 %v1427
    %1429 = vmatprep.subr.mxu0 0.0
    %v1430 = vand.u32 %v1289, 4294901760
    %1431 = vmatpush2.xpose.msra.mxu0 %v1430
    %1432 = vmatprep.mubr.f32.mxu0 0.0
    %v1433 = vand.u32 %v1238, 4294901760
    %v1434 = vsub.f32 %v1238, %v1433
    %v1435 = vand.u32 %v1434, 4294901760
    %v1436 = vsub.f32 %v1434, %v1435
    %v1437 = vand.u32 %v1436, 4294901760
    %1438 = vmatmul.mubr.f32.gmra.mxu0 %v1437
    %v1439 = vpop.f32.mrf.mxu0
    %v1440 = vadd.f32 %v1236, %v1439
    %v1441 = vpop.f32.mrf.mxu0
    %v1442 = vadd.f32 %v1236, %v1441
    %1443 = vdwg.mxu0
    %1444 = vmatprep.subr.mxu0 0.0
    %v1445 = vand.u32 %v1286, 4294901760
    %v1446 = vsub.f32 %v1286, %v1445
    %v1447 = vand.u32 %v1446, 4294901760
    %v1448 = vsub.f32 %v1446, %v1447
    %v1449 = vand.u32 %v1448, 4294901760
    %1450 = vmatpush1.xpose.msra.mxu0 %v1449
    %1451 = vmatprep.subr.mxu0 0.0
    %v1452 = vand.u32 %v1283, 4294901760
    %v1453 = vsub.f32 %v1283, %v1452
    %v1454 = vand.u32 %v1453, 4294901760
    %v1455 = vsub.f32 %v1453, %v1454
    %v1456 = vand.u32 %v1455, 4294901760
    %1457 = vmatpush1.xpose.msra.mxu0 %v1456
    %1458 = vmatprep.subr.mxu0 0.0
    %v1459 = vand.u32 %v1280, 4294901760
    %v1460 = vsub.f32 %v1280, %v1459
    %v1461 = vand.u32 %v1460, 4294901760
    %v1462 = vsub.f32 %v1460, %v1461
    %v1463 = vand.u32 %v1462, 4294901760
    %1464 = vmatpush1.xpose.msra.mxu0 %v1463
    %1465 = vmatprep.subr.mxu0 0.0
    %v1466 = vand.u32 %v1277, 4294901760
    %v1467 = vsub.f32 %v1277, %v1466
    %v1468 = vand.u32 %v1467, 4294901760
    %v1469 = vsub.f32 %v1467, %v1468
    %v1470 = vand.u32 %v1469, 4294901760
    %1471 = vmatpush1.xpose.msra.mxu0 %v1470
    %1472 = vmatprep.subr.mxu0 0.0
    %v1473 = vand.u32 %v1274, 4294901760
    %v1474 = vsub.f32 %v1274, %v1473
    %v1475 = vand.u32 %v1474, 4294901760
    %v1476 = vsub.f32 %v1474, %v1475
    %v1477 = vand.u32 %v1476, 4294901760
    %1478 = vmatpush1.xpose.msra.mxu0 %v1477
    %1479 = vmatprep.subr.mxu0 0.0
    %v1480 = vand.u32 %v1271, 4294901760
    %v1481 = vsub.f32 %v1271, %v1480
    %v1482 = vand.u32 %v1481, 4294901760
    %v1483 = vsub.f32 %v1481, %v1482
    %v1484 = vand.u32 %v1483, 4294901760
    %1485 = vmatpush1.xpose.msra.mxu0 %v1484
    %1486 = vmatprep.subr.mxu0 0.0
    %v1487 = vand.u32 %v1268, 4294901760
    %v1488 = vsub.f32 %v1268, %v1487
    %v1489 = vand.u32 %v1488, 4294901760
    %v1490 = vsub.f32 %v1488, %v1489
    %v1491 = vand.u32 %v1490, 4294901760
    %1492 = vmatpush1.xpose.msra.mxu0 %v1491
    %1493 = vmatprep.subr.mxu0 0.0
    %v1494 = vand.u32 %v1265, 4294901760
    %v1495 = vsub.f32 %v1265, %v1494
    %v1496 = vand.u32 %v1495, 4294901760
    %v1497 = vsub.f32 %v1495, %v1496
    %v1498 = vand.u32 %v1497, 4294901760
    %1499 = vmatpush1.xpose.msra.mxu0 %v1498
    %1500 = vmatprep.subr.mxu0 0.0
    %v1501 = vand.u32 %v1262, 4294901760
    %v1502 = vsub.f32 %v1262, %v1501
    %v1503 = vand.u32 %v1502, 4294901760
    %v1504 = vsub.f32 %v1502, %v1503
    %v1505 = vand.u32 %v1504, 4294901760
    %1506 = vmatpush1.xpose.msra.mxu0 %v1505
    %1507 = vmatprep.subr.mxu0 0.0
    %v1508 = vand.u32 %v1259, 4294901760
    %v1509 = vsub.f32 %v1259, %v1508
    %v1510 = vand.u32 %v1509, 4294901760
    %v1511 = vsub.f32 %v1509, %v1510
    %v1512 = vand.u32 %v1511, 4294901760
    %1513 = vmatpush1.xpose.msra.mxu0 %v1512
    %1514 = vmatprep.subr.mxu0 0.0
    %v1515 = vand.u32 %v1256, 4294901760
    %v1516 = vsub.f32 %v1256, %v1515
    %v1517 = vand.u32 %v1516, 4294901760
    %v1518 = vsub.f32 %v1516, %v1517
    %v1519 = vand.u32 %v1518, 4294901760
    %1520 = vmatpush1.xpose.msra.mxu0 %v1519
    %1521 = vmatprep.subr.mxu0 0.0
    %v1522 = vand.u32 %v1253, 4294901760
    %v1523 = vsub.f32 %v1253, %v1522
    %v1524 = vand.u32 %v1523, 4294901760
    %v1525 = vsub.f32 %v1523, %v1524
    %v1526 = vand.u32 %v1525, 4294901760
    %1527 = vmatpush1.xpose.msra.mxu0 %v1526
    %1528 = vmatprep.subr.mxu0 0.0
    %v1529 = vand.u32 %v1250, 4294901760
    %v1530 = vsub.f32 %v1250, %v1529
    %v1531 = vand.u32 %v1530, 4294901760
    %v1532 = vsub.f32 %v1530, %v1531
    %v1533 = vand.u32 %v1532, 4294901760
    %1534 = vmatpush1.xpose.msra.mxu0 %v1533
    %1535 = vmatprep.subr.mxu0 0.0
    %v1536 = vand.u32 %v1247, 4294901760
    %v1537 = vsub.f32 %v1247, %v1536
    %v1538 = vand.u32 %v1537, 4294901760
    %v1539 = vsub.f32 %v1537, %v1538
    %v1540 = vand.u32 %v1539, 4294901760
    %1541 = vmatpush1.xpose.msra.mxu0 %v1540
    %1542 = vmatprep.subr.mxu0 0.0
    %v1543 = vand.u32 %v1244, 4294901760
    %v1544 = vsub.f32 %v1244, %v1543
    %v1545 = vand.u32 %v1544, 4294901760
    %v1546 = vsub.f32 %v1544, %v1545
    %v1547 = vand.u32 %v1546, 4294901760
    %1548 = vmatpush1.xpose.msra.mxu0 %v1547
    %1549 = vmatprep.subr.mxu0 0.0
    %v1550 = vand.u32 %v1241, 4294901760
    %v1551 = vsub.f32 %v1241, %v1550
    %v1552 = vand.u32 %v1551, 4294901760
    %v1553 = vsub.f32 %v1551, %v1552
    %v1554 = vand.u32 %v1553, 4294901760
    %1555 = vmatpush1.xpose.msra.mxu0 %v1554
    %1556 = vmatprep.subr.mxu0 0.0
    %v1557 = vand.u32 %v1334, 4294901760
    %v1558 = vsub.f32 %v1334, %v1557
    %v1559 = vand.u32 %v1558, 4294901760
    %v1560 = vsub.f32 %v1558, %v1559
    %v1561 = vand.u32 %v1560, 4294901760
    %1562 = vmatpush2.xpose.msra.mxu0 %v1561
    %1563 = vmatprep.subr.mxu0 0.0
    %v1564 = vand.u32 %v1331, 4294901760
    %v1565 = vsub.f32 %v1331, %v1564
    %v1566 = vand.u32 %v1565, 4294901760
    %v1567 = vsub.f32 %v1565, %v1566
    %v1568 = vand.u32 %v1567, 4294901760
    %1569 = vmatpush2.xpose.msra.mxu0 %v1568
    %1570 = vmatprep.subr.mxu0 0.0
    %v1571 = vand.u32 %v1328, 4294901760
    %v1572 = vsub.f32 %v1328, %v1571
    %v1573 = vand.u32 %v1572, 4294901760
    %v1574 = vsub.f32 %v1572, %v1573
    %v1575 = vand.u32 %v1574, 4294901760
    %1576 = vmatpush2.xpose.msra.mxu0 %v1575
    %1577 = vmatprep.subr.mxu0 0.0
    %v1578 = vand.u32 %v1325, 4294901760
    %v1579 = vsub.f32 %v1325, %v1578
    %v1580 = vand.u32 %v1579, 4294901760
    %v1581 = vsub.f32 %v1579, %v1580
    %v1582 = vand.u32 %v1581, 4294901760
    %1583 = vmatpush2.xpose.msra.mxu0 %v1582
    %1584 = vmatprep.subr.mxu0 0.0
    %v1585 = vand.u32 %v1322, 4294901760
    %v1586 = vsub.f32 %v1322, %v1585
    %v1587 = vand.u32 %v1586, 4294901760
    %v1588 = vsub.f32 %v1586, %v1587
    %v1589 = vand.u32 %v1588, 4294901760
    %1590 = vmatpush2.xpose.msra.mxu0 %v1589
    %1591 = vmatprep.subr.mxu0 0.0
    %v1592 = vand.u32 %v1319, 4294901760
    %v1593 = vsub.f32 %v1319, %v1592
    %v1594 = vand.u32 %v1593, 4294901760
    %v1595 = vsub.f32 %v1593, %v1594
    %v1596 = vand.u32 %v1595, 4294901760
    %1597 = vmatpush2.xpose.msra.mxu0 %v1596
    %1598 = vmatprep.subr.mxu0 0.0
    %v1599 = vand.u32 %v1316, 4294901760
    %v1600 = vsub.f32 %v1316, %v1599
    %v1601 = vand.u32 %v1600, 4294901760
    %v1602 = vsub.f32 %v1600, %v1601
    %v1603 = vand.u32 %v1602, 4294901760
    %1604 = vmatpush2.xpose.msra.mxu0 %v1603
    %1605 = vmatprep.subr.mxu0 0.0
    %v1606 = vand.u32 %v1313, 4294901760
    %v1607 = vsub.f32 %v1313, %v1606
    %v1608 = vand.u32 %v1607, 4294901760
    %v1609 = vsub.f32 %v1607, %v1608
    %v1610 = vand.u32 %v1609, 4294901760
    %1611 = vmatpush2.xpose.msra.mxu0 %v1610
    %1612 = vmatprep.subr.mxu0 0.0
    %v1613 = vand.u32 %v1310, 4294901760
    %v1614 = vsub.f32 %v1310, %v1613
    %v1615 = vand.u32 %v1614, 4294901760
    %v1616 = vsub.f32 %v1614, %v1615
    %v1617 = vand.u32 %v1616, 4294901760
    %1618 = vmatpush2.xpose.msra.mxu0 %v1617
    %1619 = vmatprep.subr.mxu0 0.0
    %v1620 = vand.u32 %v1307, 4294901760
    %v1621 = vsub.f32 %v1307, %v1620
    %v1622 = vand.u32 %v1621, 4294901760
    %v1623 = vsub.f32 %v1621, %v1622
    %v1624 = vand.u32 %v1623, 4294901760
    %1625 = vmatpush2.xpose.msra.mxu0 %v1624
    %1626 = vmatprep.subr.mxu0 0.0
    %v1627 = vand.u32 %v1304, 4294901760
    %v1628 = vsub.f32 %v1304, %v1627
    %v1629 = vand.u32 %v1628, 4294901760
    %v1630 = vsub.f32 %v1628, %v1629
    %v1631 = vand.u32 %v1630, 4294901760
    %1632 = vmatpush2.xpose.msra.mxu0 %v1631
    %1633 = vmatprep.subr.mxu0 0.0
    %v1634 = vand.u32 %v1301, 4294901760
    %v1635 = vsub.f32 %v1301, %v1634
    %v1636 = vand.u32 %v1635, 4294901760
    %v1637 = vsub.f32 %v1635, %v1636
    %v1638 = vand.u32 %v1637, 4294901760
    %1639 = vmatpush2.xpose.msra.mxu0 %v1638
    %1640 = vmatprep.subr.mxu0 0.0
    %v1641 = vand.u32 %v1298, 4294901760
    %v1642 = vsub.f32 %v1298, %v1641
    %v1643 = vand.u32 %v1642, 4294901760
    %v1644 = vsub.f32 %v1642, %v1643
    %v1645 = vand.u32 %v1644, 4294901760
    %1646 = vmatpush2.xpose.msra.mxu0 %v1645
    %1647 = vmatprep.subr.mxu0 0.0
    %v1648 = vand.u32 %v1295, 4294901760
    %v1649 = vsub.f32 %v1295, %v1648
    %v1650 = vand.u32 %v1649, 4294901760
    %v1651 = vsub.f32 %v1649, %v1650
    %v1652 = vand.u32 %v1651, 4294901760
    %1653 = vmatpush2.xpose.msra.mxu0 %v1652
    %1654 = vmatprep.subr.mxu0 0.0
    %v1655 = vand.u32 %v1292, 4294901760
    %v1656 = vsub.f32 %v1292, %v1655
    %v1657 = vand.u32 %v1656, 4294901760
    %v1658 = vsub.f32 %v1656, %v1657
    %v1659 = vand.u32 %v1658, 4294901760
    %1660 = vmatpush2.xpose.msra.mxu0 %v1659
    %1661 = vmatprep.subr.mxu0 0.0
    %v1662 = vand.u32 %v1289, 4294901760
    %v1663 = vsub.f32 %v1289, %v1662
    %v1664 = vand.u32 %v1663, 4294901760
    %v1665 = vsub.f32 %v1663, %v1664
    %v1666 = vand.u32 %v1665, 4294901760
    %1667 = vmatpush2.xpose.msra.mxu0 %v1666
    %1668 = vmatprep.mubr.f32.mxu0 0.0
    %v1669 = vand.u32 %v1238, 4294901760
    %1670 = vmatmul.mubr.f32.gmra.mxu0 %v1669
    %v1671 = vpop.f32.mrf.mxu0
    %v1672 = vadd.f32 %v1440, %v1671
    %v1673 = vpop.f32.mrf.mxu0
    %v1674 = vadd.f32 %v1442, %v1673
    %1675 = vdwg.mxu0
    %1676 = vmatprep.subr.mxu0 0.0
    %v1677 = vand.u32 %v1286, 4294901760
    %v1678 = vsub.f32 %v1286, %v1677
    %1679 = vmatpush1.xpose.msra.mxu0 %v1678
    %1680 = vmatprep.subr.mxu0 0.0
    %v1681 = vand.u32 %v1283, 4294901760
    %v1682 = vsub.f32 %v1283, %v1681
    %1683 = vmatpush1.xpose.msra.mxu0 %v1682
    %1684 = vmatprep.subr.mxu0 0.0
    %v1685 = vand.u32 %v1280, 4294901760
    %v1686 = vsub.f32 %v1280, %v1685
    %1687 = vmatpush1.xpose.msra.mxu0 %v1686
    %1688 = vmatprep.subr.mxu0 0.0
    %v1689 = vand.u32 %v1277, 4294901760
    %v1690 = vsub.f32 %v1277, %v1689
    %1691 = vmatpush1.xpose.msra.mxu0 %v1690
    %1692 = vmatprep.subr.mxu0 0.0
    %v1693 = vand.u32 %v1274, 4294901760
    %v1694 = vsub.f32 %v1274, %v1693
    %1695 = vmatpush1.xpose.msra.mxu0 %v1694
    %1696 = vmatprep.subr.mxu0 0.0
    %v1697 = vand.u32 %v1271, 4294901760
    %v1698 = vsub.f32 %v1271, %v1697
    %1699 = vmatpush1.xpose.msra.mxu0 %v1698
    %1700 = vmatprep.subr.mxu0 0.0
    %v1701 = vand.u32 %v1268, 4294901760
    %v1702 = vsub.f32 %v1268, %v1701
    %1703 = vmatpush1.xpose.msra.mxu0 %v1702
    %1704 = vmatprep.subr.mxu0 0.0
    %v1705 = vand.u32 %v1265, 4294901760
    %v1706 = vsub.f32 %v1265, %v1705
    %1707 = vmatpush1.xpose.msra.mxu0 %v1706
    %1708 = vmatprep.subr.mxu0 0.0
    %v1709 = vand.u32 %v1262, 4294901760
    %v1710 = vsub.f32 %v1262, %v1709
    %1711 = vmatpush1.xpose.msra.mxu0 %v1710
    %1712 = vmatprep.subr.mxu0 0.0
    %v1713 = vand.u32 %v1259, 4294901760
    %v1714 = vsub.f32 %v1259, %v1713
    %1715 = vmatpush1.xpose.msra.mxu0 %v1714
    %1716 = vmatprep.subr.mxu0 0.0
    %v1717 = vand.u32 %v1256, 4294901760
    %v1718 = vsub.f32 %v1256, %v1717
    %1719 = vmatpush1.xpose.msra.mxu0 %v1718
    %1720 = vmatprep.subr.mxu0 0.0
    %v1721 = vand.u32 %v1253, 4294901760
    %v1722 = vsub.f32 %v1253, %v1721
    %1723 = vmatpush1.xpose.msra.mxu0 %v1722
    %1724 = vmatprep.subr.mxu0 0.0
    %v1725 = vand.u32 %v1250, 4294901760
    %v1726 = vsub.f32 %v1250, %v1725
    %1727 = vmatpush1.xpose.msra.mxu0 %v1726
    %1728 = vmatprep.subr.mxu0 0.0
    %v1729 = vand.u32 %v1247, 4294901760
    %v1730 = vsub.f32 %v1247, %v1729
    %1731 = vmatpush1.xpose.msra.mxu0 %v1730
    %1732 = vmatprep.subr.mxu0 0.0
    %v1733 = vand.u32 %v1244, 4294901760
    %v1734 = vsub.f32 %v1244, %v1733
    %1735 = vmatpush1.xpose.msra.mxu0 %v1734
    %1736 = vmatprep.subr.mxu0 0.0
    %v1737 = vand.u32 %v1241, 4294901760
    %v1738 = vsub.f32 %v1241, %v1737
    %1739 = vmatpush1.xpose.msra.mxu0 %v1738
    %1740 = vmatprep.subr.mxu0 0.0
    %v1741 = vand.u32 %v1334, 4294901760
    %v1742 = vsub.f32 %v1334, %v1741
    %1743 = vmatpush2.xpose.msra.mxu0 %v1742
    %1744 = vmatprep.subr.mxu0 0.0
    %v1745 = vand.u32 %v1331, 4294901760
    %v1746 = vsub.f32 %v1331, %v1745
    %1747 = vmatpush2.xpose.msra.mxu0 %v1746
    %1748 = vmatprep.subr.mxu0 0.0
    %v1749 = vand.u32 %v1328, 4294901760
    %v1750 = vsub.f32 %v1328, %v1749
    %1751 = vmatpush2.xpose.msra.mxu0 %v1750
    %1752 = vmatprep.subr.mxu0 0.0
    %v1753 = vand.u32 %v1325, 4294901760
    %v1754 = vsub.f32 %v1325, %v1753
    %1755 = vmatpush2.xpose.msra.mxu0 %v1754
    %1756 = vmatprep.subr.mxu0 0.0
    %v1757 = vand.u32 %v1322, 4294901760
    %v1758 = vsub.f32 %v1322, %v1757
    %1759 = vmatpush2.xpose.msra.mxu0 %v1758
    %1760 = vmatprep.subr.mxu0 0.0
    %v1761 = vand.u32 %v1319, 4294901760
    %v1762 = vsub.f32 %v1319, %v1761
    %1763 = vmatpush2.xpose.msra.mxu0 %v1762
    %1764 = vmatprep.subr.mxu0 0.0
    %v1765 = vand.u32 %v1316, 4294901760
    %v1766 = vsub.f32 %v1316, %v1765
    %1767 = vmatpush2.xpose.msra.mxu0 %v1766
    %1768 = vmatprep.subr.mxu0 0.0
    %v1769 = vand.u32 %v1313, 4294901760
    %v1770 = vsub.f32 %v1313, %v1769
    %1771 = vmatpush2.xpose.msra.mxu0 %v1770
    %1772 = vmatprep.subr.mxu0 0.0
    %v1773 = vand.u32 %v1310, 4294901760
    %v1774 = vsub.f32 %v1310, %v1773
    %1775 = vmatpush2.xpose.msra.mxu0 %v1774
    %1776 = vmatprep.subr.mxu0 0.0
    %v1777 = vand.u32 %v1307, 4294901760
    %v1778 = vsub.f32 %v1307, %v1777
    %1779 = vmatpush2.xpose.msra.mxu0 %v1778
    %1780 = vmatprep.subr.mxu0 0.0
    %v1781 = vand.u32 %v1304, 4294901760
    %v1782 = vsub.f32 %v1304, %v1781
    %1783 = vmatpush2.xpose.msra.mxu0 %v1782
    %1784 = vmatprep.subr.mxu0 0.0
    %v1785 = vand.u32 %v1301, 4294901760
    %v1786 = vsub.f32 %v1301, %v1785
    %1787 = vmatpush2.xpose.msra.mxu0 %v1786
    %1788 = vmatprep.subr.mxu0 0.0
    %v1789 = vand.u32 %v1298, 4294901760
    %v1790 = vsub.f32 %v1298, %v1789
    %1791 = vmatpush2.xpose.msra.mxu0 %v1790
    %1792 = vmatprep.subr.mxu0 0.0
    %v1793 = vand.u32 %v1295, 4294901760
    %v1794 = vsub.f32 %v1295, %v1793
    %1795 = vmatpush2.xpose.msra.mxu0 %v1794
    %1796 = vmatprep.subr.mxu0 0.0
    %v1797 = vand.u32 %v1292, 4294901760
    %v1798 = vsub.f32 %v1292, %v1797
    %1799 = vmatpush2.xpose.msra.mxu0 %v1798
    %1800 = vmatprep.subr.mxu0 0.0
    %v1801 = vand.u32 %v1289, 4294901760
    %v1802 = vsub.f32 %v1289, %v1801
    %1803 = vmatpush2.xpose.msra.mxu0 %v1802
    %1804 = vmatprep.mubr.f32.mxu0 0.0
    %v1805 = vand.u32 %v1238, 4294901760
    %v1806 = vsub.f32 %v1238, %v1805
    %1807 = vmatmul.mubr.f32.gmra.mxu0 %v1806
    %v1808 = vpop.f32.mrf.mxu0
    %v1809 = vadd.f32 %v1672, %v1808
    %v1810 = vpop.f32.mrf.mxu0
    %v1811 = vadd.f32 %v1674, %v1810
    %1812 = vdwg.mxu0
    %1813 = vmatprep.subr.mxu0 0.0
    %v1814 = vand.u32 %v1286, 4294901760
    %1815 = vmatpush1.xpose.msra.mxu0 %v1814
    %1816 = vmatprep.subr.mxu0 0.0
    %v1817 = vand.u32 %v1283, 4294901760
    %1818 = vmatpush1.xpose.msra.mxu0 %v1817
    %1819 = vmatprep.subr.mxu0 0.0
    %v1820 = vand.u32 %v1280, 4294901760
    %1821 = vmatpush1.xpose.msra.mxu0 %v1820
    %1822 = vmatprep.subr.mxu0 0.0
    %v1823 = vand.u32 %v1277, 4294901760
    %1824 = vmatpush1.xpose.msra.mxu0 %v1823
    %1825 = vmatprep.subr.mxu0 0.0
    %v1826 = vand.u32 %v1274, 4294901760
    %1827 = vmatpush1.xpose.msra.mxu0 %v1826
    %1828 = vmatprep.subr.mxu0 0.0
    %v1829 = vand.u32 %v1271, 4294901760
    %1830 = vmatpush1.xpose.msra.mxu0 %v1829
    %1831 = vmatprep.subr.mxu0 0.0
    %v1832 = vand.u32 %v1268, 4294901760
    %1833 = vmatpush1.xpose.msra.mxu0 %v1832
    %1834 = vmatprep.subr.mxu0 0.0
    %v1835 = vand.u32 %v1265, 4294901760
    %1836 = vmatpush1.xpose.msra.mxu0 %v1835
    %1837 = vmatprep.subr.mxu0 0.0
    %v1838 = vand.u32 %v1262, 4294901760
    %1839 = vmatpush1.xpose.msra.mxu0 %v1838
    %1840 = vmatprep.subr.mxu0 0.0
    %v1841 = vand.u32 %v1259, 4294901760
    %1842 = vmatpush1.xpose.msra.mxu0 %v1841
    %1843 = vmatprep.subr.mxu0 0.0
    %v1844 = vand.u32 %v1256, 4294901760
    %1845 = vmatpush1.xpose.msra.mxu0 %v1844
    %1846 = vmatprep.subr.mxu0 0.0
    %v1847 = vand.u32 %v1253, 4294901760
    %1848 = vmatpush1.xpose.msra.mxu0 %v1847
    %1849 = vmatprep.subr.mxu0 0.0
    %v1850 = vand.u32 %v1250, 4294901760
    %1851 = vmatpush1.xpose.msra.mxu0 %v1850
    %1852 = vmatprep.subr.mxu0 0.0
    %v1853 = vand.u32 %v1247, 4294901760
    %1854 = vmatpush1.xpose.msra.mxu0 %v1853
    %1855 = vmatprep.subr.mxu0 0.0
    %v1856 = vand.u32 %v1244, 4294901760
    %1857 = vmatpush1.xpose.msra.mxu0 %v1856
    %1858 = vmatprep.subr.mxu0 0.0
    %v1859 = vand.u32 %v1241, 4294901760
    %1860 = vmatpush1.xpose.msra.mxu0 %v1859
    %1861 = vmatprep.subr.mxu0 0.0
    %v1862 = vand.u32 %v1334, 4294901760
    %1863 = vmatpush2.xpose.msra.mxu0 %v1862
    %1864 = vmatprep.subr.mxu0 0.0
    %v1865 = vand.u32 %v1331, 4294901760
    %1866 = vmatpush2.xpose.msra.mxu0 %v1865
    %1867 = vmatprep.subr.mxu0 0.0
    %v1868 = vand.u32 %v1328, 4294901760
    %1869 = vmatpush2.xpose.msra.mxu0 %v1868
    %1870 = vmatprep.subr.mxu0 0.0
    %v1871 = vand.u32 %v1325, 4294901760
    %1872 = vmatpush2.xpose.msra.mxu0 %v1871
    %1873 = vmatprep.subr.mxu0 0.0
    %v1874 = vand.u32 %v1322, 4294901760
    %1875 = vmatpush2.xpose.msra.mxu0 %v1874
    %1876 = vmatprep.subr.mxu0 0.0
    %v1877 = vand.u32 %v1319, 4294901760
    %1878 = vmatpush2.xpose.msra.mxu0 %v1877
    %1879 = vmatprep.subr.mxu0 0.0
    %v1880 = vand.u32 %v1316, 4294901760
    %1881 = vmatpush2.xpose.msra.mxu0 %v1880
    %1882 = vmatprep.subr.mxu0 0.0
    %v1883 = vand.u32 %v1313, 4294901760
    %1884 = vmatpush2.xpose.msra.mxu0 %v1883
    %1885 = vmatprep.subr.mxu0 0.0
    %v1886 = vand.u32 %v1310, 4294901760
    %1887 = vmatpush2.xpose.msra.mxu0 %v1886
    %1888 = vmatprep.subr.mxu0 0.0
    %v1889 = vand.u32 %v1307, 4294901760
    %1890 = vmatpush2.xpose.msra.mxu0 %v1889
    %1891 = vmatprep.subr.mxu0 0.0
    %v1892 = vand.u32 %v1304, 4294901760
    %1893 = vmatpush2.xpose.msra.mxu0 %v1892
    %1894 = vmatprep.subr.mxu0 0.0
    %v1895 = vand.u32 %v1301, 4294901760
    %1896 = vmatpush2.xpose.msra.mxu0 %v1895
    %1897 = vmatprep.subr.mxu0 0.0
    %v1898 = vand.u32 %v1298, 4294901760
    %1899 = vmatpush2.xpose.msra.mxu0 %v1898
    %1900 = vmatprep.subr.mxu0 0.0
    %v1901 = vand.u32 %v1295, 4294901760
    %1902 = vmatpush2.xpose.msra.mxu0 %v1901
    %1903 = vmatprep.subr.mxu0 0.0
    %v1904 = vand.u32 %v1292, 4294901760
    %1905 = vmatpush2.xpose.msra.mxu0 %v1904
    %1906 = vmatprep.subr.mxu0 0.0
    %v1907 = vand.u32 %v1289, 4294901760
    %1908 = vmatpush2.xpose.msra.mxu0 %v1907
    %1909 = vmatprep.mubr.f32.mxu0 0.0
    %v1910 = vand.u32 %v1238, 4294901760
    %v1911 = vsub.f32 %v1238, %v1910
    %v1912 = vand.u32 %v1911, 4294901760
    %1913 = vmatmul.mubr.f32.gmra.mxu0 %v1912
    %v1914 = vpop.f32.mrf.mxu0
    %v1915 = vadd.f32 %v1809, %v1914
    %v1916 = vpop.f32.mrf.mxu0
    %v1917 = vadd.f32 %v1811, %v1916
    %1918 = vdwg.mxu0
    %1919 = vmatprep.subr.mxu0 0.0
    %v1920 = vand.u32 %v1286, 4294901760
    %v1921 = vsub.f32 %v1286, %v1920
    %v1922 = vand.u32 %v1921, 4294901760
    %1923 = vmatpush1.xpose.msra.mxu0 %v1922
    %1924 = vmatprep.subr.mxu0 0.0
    %v1925 = vand.u32 %v1283, 4294901760
    %v1926 = vsub.f32 %v1283, %v1925
    %v1927 = vand.u32 %v1926, 4294901760
    %1928 = vmatpush1.xpose.msra.mxu0 %v1927
    %1929 = vmatprep.subr.mxu0 0.0
    %v1930 = vand.u32 %v1280, 4294901760
    %v1931 = vsub.f32 %v1280, %v1930
    %v1932 = vand.u32 %v1931, 4294901760
    %1933 = vmatpush1.xpose.msra.mxu0 %v1932
    %1934 = vmatprep.subr.mxu0 0.0
    %v1935 = vand.u32 %v1277, 4294901760
    %v1936 = vsub.f32 %v1277, %v1935
    %v1937 = vand.u32 %v1936, 4294901760
    %1938 = vmatpush1.xpose.msra.mxu0 %v1937
    %1939 = vmatprep.subr.mxu0 0.0
    %v1940 = vand.u32 %v1274, 4294901760
    %v1941 = vsub.f32 %v1274, %v1940
    %v1942 = vand.u32 %v1941, 4294901760
    %1943 = vmatpush1.xpose.msra.mxu0 %v1942
    %1944 = vmatprep.subr.mxu0 0.0
    %v1945 = vand.u32 %v1271, 4294901760
    %v1946 = vsub.f32 %v1271, %v1945
    %v1947 = vand.u32 %v1946, 4294901760
    %1948 = vmatpush1.xpose.msra.mxu0 %v1947
    %1949 = vmatprep.subr.mxu0 0.0
    %v1950 = vand.u32 %v1268, 4294901760
    %v1951 = vsub.f32 %v1268, %v1950
    %v1952 = vand.u32 %v1951, 4294901760
    %1953 = vmatpush1.xpose.msra.mxu0 %v1952
    %1954 = vmatprep.subr.mxu0 0.0
    %v1955 = vand.u32 %v1265, 4294901760
    %v1956 = vsub.f32 %v1265, %v1955
    %v1957 = vand.u32 %v1956, 4294901760
    %1958 = vmatpush1.xpose.msra.mxu0 %v1957
    %1959 = vmatprep.subr.mxu0 0.0
    %v1960 = vand.u32 %v1262, 4294901760
    %v1961 = vsub.f32 %v1262, %v1960
    %v1962 = vand.u32 %v1961, 4294901760
    %1963 = vmatpush1.xpose.msra.mxu0 %v1962
    %1964 = vmatprep.subr.mxu0 0.0
    %v1965 = vand.u32 %v1259, 4294901760
    %v1966 = vsub.f32 %v1259, %v1965
    %v1967 = vand.u32 %v1966, 4294901760
    %1968 = vmatpush1.xpose.msra.mxu0 %v1967
    %1969 = vmatprep.subr.mxu0 0.0
    %v1970 = vand.u32 %v1256, 4294901760
    %v1971 = vsub.f32 %v1256, %v1970
    %v1972 = vand.u32 %v1971, 4294901760
    %1973 = vmatpush1.xpose.msra.mxu0 %v1972
    %1974 = vmatprep.subr.mxu0 0.0
    %v1975 = vand.u32 %v1253, 4294901760
    %v1976 = vsub.f32 %v1253, %v1975
    %v1977 = vand.u32 %v1976, 4294901760
    %1978 = vmatpush1.xpose.msra.mxu0 %v1977
    %1979 = vmatprep.subr.mxu0 0.0
    %v1980 = vand.u32 %v1250, 4294901760
    %v1981 = vsub.f32 %v1250, %v1980
    %v1982 = vand.u32 %v1981, 4294901760
    %1983 = vmatpush1.xpose.msra.mxu0 %v1982
    %1984 = vmatprep.subr.mxu0 0.0
    %v1985 = vand.u32 %v1247, 4294901760
    %v1986 = vsub.f32 %v1247, %v1985
    %v1987 = vand.u32 %v1986, 4294901760
    %1988 = vmatpush1.xpose.msra.mxu0 %v1987
    %1989 = vmatprep.subr.mxu0 0.0
    %v1990 = vand.u32 %v1244, 4294901760
    %v1991 = vsub.f32 %v1244, %v1990
    %v1992 = vand.u32 %v1991, 4294901760
    %1993 = vmatpush1.xpose.msra.mxu0 %v1992
    %1994 = vmatprep.subr.mxu0 0.0
    %v1995 = vand.u32 %v1241, 4294901760
    %v1996 = vsub.f32 %v1241, %v1995
    %v1997 = vand.u32 %v1996, 4294901760
    %1998 = vmatpush1.xpose.msra.mxu0 %v1997
    %1999 = vmatprep.subr.mxu0 0.0
    %v2000 = vand.u32 %v1334, 4294901760
    %v2001 = vsub.f32 %v1334, %v2000
    %v2002 = vand.u32 %v2001, 4294901760
    %2003 = vmatpush2.xpose.msra.mxu0 %v2002
    %2004 = vmatprep.subr.mxu0 0.0
    %v2005 = vand.u32 %v1331, 4294901760
    %v2006 = vsub.f32 %v1331, %v2005
    %v2007 = vand.u32 %v2006, 4294901760
    %2008 = vmatpush2.xpose.msra.mxu0 %v2007
    %2009 = vmatprep.subr.mxu0 0.0
    %v2010 = vand.u32 %v1328, 4294901760
    %v2011 = vsub.f32 %v1328, %v2010
    %v2012 = vand.u32 %v2011, 4294901760
    %2013 = vmatpush2.xpose.msra.mxu0 %v2012
    %2014 = vmatprep.subr.mxu0 0.0
    %v2015 = vand.u32 %v1325, 4294901760
    %v2016 = vsub.f32 %v1325, %v2015
    %v2017 = vand.u32 %v2016, 4294901760
    %2018 = vmatpush2.xpose.msra.mxu0 %v2017
    %2019 = vmatprep.subr.mxu0 0.0
    %v2020 = vand.u32 %v1322, 4294901760
    %v2021 = vsub.f32 %v1322, %v2020
    %v2022 = vand.u32 %v2021, 4294901760
    %2023 = vmatpush2.xpose.msra.mxu0 %v2022
    %2024 = vmatprep.subr.mxu0 0.0
    %v2025 = vand.u32 %v1319, 4294901760
    %v2026 = vsub.f32 %v1319, %v2025
    %v2027 = vand.u32 %v2026, 4294901760
    %2028 = vmatpush2.xpose.msra.mxu0 %v2027
    %2029 = vmatprep.subr.mxu0 0.0
    %v2030 = vand.u32 %v1316, 4294901760
    %v2031 = vsub.f32 %v1316, %v2030
    %v2032 = vand.u32 %v2031, 4294901760
    %2033 = vmatpush2.xpose.msra.mxu0 %v2032
    %2034 = vmatprep.subr.mxu0 0.0
    %v2035 = vand.u32 %v1313, 4294901760
    %v2036 = vsub.f32 %v1313, %v2035
    %v2037 = vand.u32 %v2036, 4294901760
    %2038 = vmatpush2.xpose.msra.mxu0 %v2037
    %2039 = vmatprep.subr.mxu0 0.0
    %v2040 = vand.u32 %v1310, 4294901760
    %v2041 = vsub.f32 %v1310, %v2040
    %v2042 = vand.u32 %v2041, 4294901760
    %2043 = vmatpush2.xpose.msra.mxu0 %v2042
    %2044 = vmatprep.subr.mxu0 0.0
    %v2045 = vand.u32 %v1307, 4294901760
    %v2046 = vsub.f32 %v1307, %v2045
    %v2047 = vand.u32 %v2046, 4294901760
    %2048 = vmatpush2.xpose.msra.mxu0 %v2047
    %2049 = vmatprep.subr.mxu0 0.0
    %v2050 = vand.u32 %v1304, 4294901760
    %v2051 = vsub.f32 %v1304, %v2050
    %v2052 = vand.u32 %v2051, 4294901760
    %2053 = vmatpush2.xpose.msra.mxu0 %v2052
    %2054 = vmatprep.subr.mxu0 0.0
    %v2055 = vand.u32 %v1301, 4294901760
    %v2056 = vsub.f32 %v1301, %v2055
    %v2057 = vand.u32 %v2056, 4294901760
    %2058 = vmatpush2.xpose.msra.mxu0 %v2057
    %2059 = vmatprep.subr.mxu0 0.0
    %v2060 = vand.u32 %v1298, 4294901760
    %v2061 = vsub.f32 %v1298, %v2060
    %v2062 = vand.u32 %v2061, 4294901760
    %2063 = vmatpush2.xpose.msra.mxu0 %v2062
    %2064 = vmatprep.subr.mxu0 0.0
    %v2065 = vand.u32 %v1295, 4294901760
    %v2066 = vsub.f32 %v1295, %v2065
    %v2067 = vand.u32 %v2066, 4294901760
    %2068 = vmatpush2.xpose.msra.mxu0 %v2067
    %2069 = vmatprep.subr.mxu0 0.0
    %v2070 = vand.u32 %v1292, 4294901760
    %v2071 = vsub.f32 %v1292, %v2070
    %v2072 = vand.u32 %v2071, 4294901760
    %2073 = vmatpush2.xpose.msra.mxu0 %v2072
    %2074 = vmatprep.subr.mxu0 0.0
    %v2075 = vand.u32 %v1289, 4294901760
    %v2076 = vsub.f32 %v1289, %v2075
    %v2077 = vand.u32 %v2076, 4294901760
    %2078 = vmatpush2.xpose.msra.mxu0 %v2077
    %2079 = vmatprep.mubr.f32.mxu0 0.0
    %v2080 = vand.u32 %v1238, 4294901760
    %2081 = vmatmul.mubr.f32.gmra.mxu0 %v2080
    %v2082 = vpop.f32.mrf.mxu0
    %v2083 = vadd.f32 %v1915, %v2082
    %v2084 = vpop.f32.mrf.mxu0
    %v2085 = vadd.f32 %v1917, %v2084
    %2086 = vdwg.mxu0
    %2087 = vmatprep.subr.mxu0 0.0
    %v2088 = vand.u32 %v1286, 4294901760
    %2089 = vmatpush1.xpose.msra.mxu0 %v2088
    %2090 = vmatprep.subr.mxu0 0.0
    %v2091 = vand.u32 %v1283, 4294901760
    %2092 = vmatpush1.xpose.msra.mxu0 %v2091
    %2093 = vmatprep.subr.mxu0 0.0
    %v2094 = vand.u32 %v1280, 4294901760
    %2095 = vmatpush1.xpose.msra.mxu0 %v2094
    %2096 = vmatprep.subr.mxu0 0.0
    %v2097 = vand.u32 %v1277, 4294901760
    %2098 = vmatpush1.xpose.msra.mxu0 %v2097
    %2099 = vmatprep.subr.mxu0 0.0
    %v2100 = vand.u32 %v1274, 4294901760
    %2101 = vmatpush1.xpose.msra.mxu0 %v2100
    %2102 = vmatprep.subr.mxu0 0.0
    %v2103 = vand.u32 %v1271, 4294901760
    %2104 = vmatpush1.xpose.msra.mxu0 %v2103
    %2105 = vmatprep.subr.mxu0 0.0
    %v2106 = vand.u32 %v1268, 4294901760
    %2107 = vmatpush1.xpose.msra.mxu0 %v2106
    %2108 = vmatprep.subr.mxu0 0.0
    %v2109 = vand.u32 %v1265, 4294901760
    %2110 = vmatpush1.xpose.msra.mxu0 %v2109
    %2111 = vmatprep.subr.mxu0 0.0
    %v2112 = vand.u32 %v1262, 4294901760
    %2113 = vmatpush1.xpose.msra.mxu0 %v2112
    %2114 = vmatprep.subr.mxu0 0.0
    %v2115 = vand.u32 %v1259, 4294901760
    %2116 = vmatpush1.xpose.msra.mxu0 %v2115
    %2117 = vmatprep.subr.mxu0 0.0
    %v2118 = vand.u32 %v1256, 4294901760
    %2119 = vmatpush1.xpose.msra.mxu0 %v2118
    %2120 = vmatprep.subr.mxu0 0.0
    %v2121 = vand.u32 %v1253, 4294901760
    %2122 = vmatpush1.xpose.msra.mxu0 %v2121
    %2123 = vmatprep.subr.mxu0 0.0
    %v2124 = vand.u32 %v1250, 4294901760
    %2125 = vmatpush1.xpose.msra.mxu0 %v2124
    %2126 = vmatprep.subr.mxu0 0.0
    %v2127 = vand.u32 %v1247, 4294901760
    %2128 = vmatpush1.xpose.msra.mxu0 %v2127
    %2129 = vmatprep.subr.mxu0 0.0
    %v2130 = vand.u32 %v1244, 4294901760
    %2131 = vmatpush1.xpose.msra.mxu0 %v2130
    %2132 = vmatprep.subr.mxu0 0.0
    %v2133 = vand.u32 %v1241, 4294901760
    %2134 = vmatpush1.xpose.msra.mxu0 %v2133
    %2135 = vmatprep.subr.mxu0 0.0
    %v2136 = vand.u32 %v1334, 4294901760
    %2137 = vmatpush2.xpose.msra.mxu0 %v2136
    %2138 = vmatprep.subr.mxu0 0.0
    %v2139 = vand.u32 %v1331, 4294901760
    %2140 = vmatpush2.xpose.msra.mxu0 %v2139
    %2141 = vmatprep.subr.mxu0 0.0
    %v2142 = vand.u32 %v1328, 4294901760
    %2143 = vmatpush2.xpose.msra.mxu0 %v2142
    %2144 = vmatprep.subr.mxu0 0.0
    %v2145 = vand.u32 %v1325, 4294901760
    %2146 = vmatpush2.xpose.msra.mxu0 %v2145
    %2147 = vmatprep.subr.mxu0 0.0
    %v2148 = vand.u32 %v1322, 4294901760
    %2149 = vmatpush2.xpose.msra.mxu0 %v2148
    %2150 = vmatprep.subr.mxu0 0.0
    %v2151 = vand.u32 %v1319, 4294901760
    %2152 = vmatpush2.xpose.msra.mxu0 %v2151
    %2153 = vmatprep.subr.mxu0 0.0
    %v2154 = vand.u32 %v1316, 4294901760
    %2155 = vmatpush2.xpose.msra.mxu0 %v2154
    %2156 = vmatprep.subr.mxu0 0.0
    %v2157 = vand.u32 %v1313, 4294901760
    %2158 = vmatpush2.xpose.msra.mxu0 %v2157
    %2159 = vmatprep.subr.mxu0 0.0
    %v2160 = vand.u32 %v1310, 4294901760
    %2161 = vmatpush2.xpose.msra.mxu0 %v2160
    %2162 = vmatprep.subr.mxu0 0.0
    %v2163 = vand.u32 %v1307, 4294901760
    %2164 = vmatpush2.xpose.msra.mxu0 %v2163
    %2165 = vmatprep.subr.mxu0 0.0
    %v2166 = vand.u32 %v1304, 4294901760
    %2167 = vmatpush2.xpose.msra.mxu0 %v2166
    %2168 = vmatprep.subr.mxu0 0.0
    %v2169 = vand.u32 %v1301, 4294901760
    %2170 = vmatpush2.xpose.msra.mxu0 %v2169
    %2171 = vmatprep.subr.mxu0 0.0
    %v2172 = vand.u32 %v1298, 4294901760
    %2173 = vmatpush2.xpose.msra.mxu0 %v2172
    %2174 = vmatprep.subr.mxu0 0.0
    %v2175 = vand.u32 %v1295, 4294901760
    %2176 = vmatpush2.xpose.msra.mxu0 %v2175
    %2177 = vmatprep.subr.mxu0 0.0
    %v2178 = vand.u32 %v1292, 4294901760
    %2179 = vmatpush2.xpose.msra.mxu0 %v2178
    %2180 = vmatprep.subr.mxu0 0.0
    %v2181 = vand.u32 %v1289, 4294901760
    %2182 = vmatpush2.xpose.msra.mxu0 %v2181
    %2183 = vmatprep.mubr.f32.mxu0 0.0
    %v2184 = vand.u32 %v1238, 4294901760
    %2185 = vmatmul.mubr.f32.gmra.mxu0 %v2184
    %v2186 = vpop.f32.mrf.mxu0
    %v2187 = vadd.f32 %v2083, %v2186
    %v2188 = vpop.f32.mrf.mxu0
    %v2189 = vadd.f32 %v2085, %v2188
    %2190 = vdwg.mxu0
    %v2193 = vcombine.low %v2187, %v2189
    %v2195 = vunpack.c.l.s4 1966171168
    %v2196 = vunpack.c.0.s8 %v2195
    %v2197 = vlaneseq
    %v2198 = vshrl.u32 %v2197, 7
    %v2199 = vsub.s32 %v2196, %v2198
    %v2200 = vrot.slane %v2193, %v2199
    %v2202 = vunpack.c.l.s4 1966171168
    %v2203 = vunpack.c.0.s8 %v2202
    %v2204 = vlaneseq
    %v2205 = vshrl.u32 %v2204, 7
    %v2206 = vsub.s32 %v2203, %v2205
    %v2207 = vrot.slane %v2200, %v2206
    %v2209 = vlaneseq
    %vm2210 = vcmp.ge.s32.totalorder %v2209, 0
    %vm2211 = vcmp.lt.s32.totalorder %v2209, 256
    %vm2212 = vmand %vm2210, %vm2211
    %2213 = vst.msk [vmem:[#allocation3] sm:$0x3] %vm2212, %v2207
    // Predicated region
    $region26: #{tpu_custom_call.1} parent=1 // pred_check
      _
    $region27: #{tpu_custom_call.1} parent=1 // pred_check_branch
      %2215 = sbr.rel (0) target = $region29
    $region28: #{tpu_custom_call.1} parent=1 // pred_region
      %s2217 = ssub.s32 32, 32
      %2218 = vsyncadd [#allocation4], %s2217
      %s2220 = sshll.u32 [#allocation3], 4
      %s2221 = int_to_ptr.vmem [resolvable:$true] %s2220
      %2223 = dma.vmem_to_hbm [thread:$0]  %s2221, 32, %s6, [#allocation4]
    $region29: #{tpu_custom_call.1} parent=1 // pred_fallthru
      _
    // Predicated region
    $region30: #{tpu_custom_call.1} parent=1 // pred_check
      _
    $region31: #{tpu_custom_call.1} parent=1 // pred_check_branch
      %2225 = sbr.rel (0) target = $region33
    $region32: #{tpu_custom_call.1} parent=1 // pred_region
      %2226 = dma.done [#allocation4], 32
    $region33: #{tpu_custom_call.1} parent=1 // pred_fallthru
      _
    %2227 = vsyncpa [#allocation4], 1

</llo_original>
